<compile_context>
chip_gen: v7x
topology: tpu7x:2x2x1
jax: 0.10.0
libtpu: 0.0.40
codegen_flags: <defaults>
</compile_context>

<pallas_src>
import functools

import jax
import jax.numpy as jnp
from jax.experimental import pallas as pl
from jax.experimental.pallas import tpu as pltpu


# -----------------------------------------------------------------------------
# Pallas kernels
# -----------------------------------------------------------------------------
def _encoder_kernel(x_ref, a_ref, wx_ref, wh_ref, b_ref,
                    h_out_ref, c_out_ref, h_sc, c_sc):
    """One encoder timestep; grid axis 0 = time.

    combined_conv = A_hat @ (x @ Wx + h @ Wh) + b      (Wx/Wh: row-split of W)
    f, i, o, g    = split(combined_conv, 4, axis=1)
    c_next        = sigmoid(f) * c + sigmoid(i) * tanh(g)
    h_next        = sigmoid(o) * tanh(c_next)
    h/c persist in VMEM scratch across grid steps; final state is written to
    the output refs only on the last step.
    """
    t = pl.program_id(0)
    n_steps = pl.num_programs(0)
    hdim = h_sc.shape[1]

    @pl.when(t == 0)
    def _():
        h_sc[...] = jnp.zeros_like(h_sc)
        c_sc[...] = jnp.zeros_like(c_sc)

    x = x_ref[0]                                         # (N, C_in)
    xw = jnp.dot(x, wx_ref[0], preferred_element_type=jnp.float32)
    hw = jnp.dot(h_sc[...], wh_ref[0], preferred_element_type=jnp.float32)
    conv = jnp.dot(a_ref[...], xw + hw,
                   preferred_element_type=jnp.float32) + b_ref[0]

    # Full-tile transcendentals (EUP slot), then lane-slice to combine gates.
    sig = jax.nn.sigmoid(conv)
    tnh = jnp.tanh(conv)
    f = sig[:, 0 * hdim:1 * hdim]
    i = sig[:, 1 * hdim:2 * hdim]
    o = sig[:, 2 * hdim:3 * hdim]
    g = tnh[:, 3 * hdim:4 * hdim]

    c_next = f * c_sc[...] + i * g
    h_next = o * jnp.tanh(c_next)
    h_sc[...] = h_next
    c_sc[...] = c_next

    @pl.when(t == n_steps - 1)
    def _():
        h_out_ref[...] = h_next
        c_out_ref[...] = c_next


def _decoder_kernel(xh_ref, xc_ref, a_ref, wpro_ref, bpro_ref,
                    wx_ref, wh_ref, b_ref, out_ref, h_sc, c_sc):
    """One decoder timestep; grid axis 0 = output time.

    t == 0: fused prologue  [conv_h(h_enc) | conv_c(c_enc)]  computed as a
            single matmul pair via a block-diagonal W_pro on cat(h_enc, c_enc).
    every t: GConvLSTM cell with fixed input x = h_enc (non-autoregressive),
             LeakyReLU(0.01) fused into the per-step output write.
    """
    t = pl.program_id(0)
    hdim = h_sc.shape[1]                                 # == output channels

    @pl.when(t == 0)
    def _():
        pro = jnp.dot(
            a_ref[...],
            jnp.dot(xc_ref[...], wpro_ref[...],
                    preferred_element_type=jnp.float32),
            preferred_element_type=jnp.float32) + bpro_ref[...]
        h_sc[...] = pro[:, :hdim]                        # conv_h(h_enc)
        c_sc[...] = pro[:, hdim:]                        # conv_c(c_enc)

    xw = jnp.dot(xh_ref[...], wx_ref[0], preferred_element_type=jnp.float32)
    hw = jnp.dot(h_sc[...], wh_ref[0], preferred_element_type=jnp.float32)
    conv = jnp.dot(a_ref[...], xw + hw,
                   preferred_element_type=jnp.float32) + b_ref[0]

    sig = jax.nn.sigmoid(conv)
    tnh = jnp.tanh(conv)
    f = sig[:, 0 * hdim:1 * hdim]
    i = sig[:, 1 * hdim:2 * hdim]
    o = sig[:, 2 * hdim:3 * hdim]
    g = tnh[:, 3 * hdim:4 * hdim]

    c_next = f * c_sc[...] + i * g
    h_next = o * jnp.tanh(c_next)
    h_sc[...] = h_next
    c_sc[...] = c_next

    # LeakyReLU(0.01) fused here; out_ref is resident in VMEM across the whole
    # grid (constant index_map) and written back to HBM once at the end.
    out_ref[t] = jnp.where(h_next >= 0.0, h_next, 0.01 * h_next)


# -----------------------------------------------------------------------------
# pallas_call wrappers (one fused call for the encoder, one for the decoder)
# -----------------------------------------------------------------------------
def _run_encoder(x, a_hat, wx_all, wh_all, b_all, hidden):
    t_in, n, c_in = x.shape
    four_h = 4 * hidden

    flops = t_in * (2 * n * c_in * four_h + 2 * n * hidden * four_h
                    + 2 * n * n * four_h)
    transcendentals = t_in * (2 * n * four_h + n * hidden)
    bytes_accessed = 4 * (x.size + wx_all.size + wh_all.size + b_all.size
                          + a_hat.size + 2 * n * hidden)

    grid_spec = pltpu.PrefetchScalarGridSpec(
        num_scalar_prefetch=0,
        grid=(t_in,),
        in_specs=[
            pl.BlockSpec((1, n, c_in), lambda t: (t, 0, 0)),       # x[t]
            pl.BlockSpec((n, n), lambda t: (0, 0)),                # A_hat, resident
            pl.BlockSpec((1, c_in, four_h), lambda t: (t, 0, 0)),  # Wx[t]
            pl.BlockSpec((1, hidden, four_h), lambda t: (t, 0, 0)),# Wh[t]
            pl.BlockSpec((1, 1, four_h), lambda t: (t, 0, 0)),     # b[t]
        ],
        out_specs=(
            pl.BlockSpec((n, hidden), lambda t: (0, 0)),           # final h
            pl.BlockSpec((n, hidden), lambda t: (0, 0)),           # final c
        ),
        scratch_shapes=[pltpu.VMEM((n, hidden), jnp.float32),
                        pltpu.VMEM((n, hidden), jnp.float32)],
    )
    return pl.pallas_call(
        _encoder_kernel,
        out_shape=(jax.ShapeDtypeStruct((n, hidden), jnp.float32),
                   jax.ShapeDtypeStruct((n, hidden), jnp.float32)),
        grid_spec=grid_spec,
        compiler_params=pltpu.CompilerParams(
            dimension_semantics=("arbitrary",)),
        cost_estimate=pl.CostEstimate(flops=flops,
                                      transcendentals=transcendentals,
                                      bytes_accessed=bytes_accessed),
    )(x, a_hat, wx_all, wh_all, b_all)


def _run_decoder(h_enc, xc, a_hat, w_pro, b_pro, wx_all, wh_all, b_all,
                 channels):
    n, hidden = h_enc.shape
    t_out = wx_all.shape[0]
    four_c = 4 * channels

    flops = (2 * n * (2 * hidden) * (2 * channels) + 2 * n * n * (2 * channels)
             + t_out * (2 * n * hidden * four_c + 2 * n * channels * four_c
                        + 2 * n * n * four_c))
    transcendentals = t_out * (2 * n * four_c + n * channels)
    bytes_accessed = 4 * (h_enc.size + xc.size + a_hat.size + w_pro.size
                          + b_pro.size + wx_all.size + wh_all.size + b_all.size
                          + t_out * n * channels)

    grid_spec = pltpu.PrefetchScalarGridSpec(
        num_scalar_prefetch=0,
        grid=(t_out,),
        in_specs=[
            pl.BlockSpec((n, hidden), lambda t: (0, 0)),               # h_enc (dec input)
            pl.BlockSpec((n, 2 * hidden), lambda t: (0, 0)),           # cat(h_enc, c_enc)
            pl.BlockSpec((n, n), lambda t: (0, 0)),                    # A_hat, resident
            pl.BlockSpec((2 * hidden, 2 * channels), lambda t: (0, 0)),# blockdiag(Wh, Wc)
            pl.BlockSpec((1, 2 * channels), lambda t: (0, 0)),         # [bh | bc]
            pl.BlockSpec((1, hidden, four_c), lambda t: (t, 0, 0)),    # Wx[t]
            pl.BlockSpec((1, channels, four_c), lambda t: (t, 0, 0)),  # Wh[t]
            pl.BlockSpec((1, 1, four_c), lambda t: (t, 0, 0)),         # b[t]
        ],
        out_specs=pl.BlockSpec((t_out, n, channels), lambda t: (0, 0, 0)),
        scratch_shapes=[pltpu.VMEM((n, channels), jnp.float32),
                        pltpu.VMEM((n, channels), jnp.float32)],
    )
    return pl.pallas_call(
        _decoder_kernel,
        out_shape=jax.ShapeDtypeStruct((t_out, n, channels), jnp.float32),
        grid_spec=grid_spec,
        compiler_params=pltpu.CompilerParams(
            dimension_semantics=("arbitrary",)),
        cost_estimate=pl.CostEstimate(flops=flops,
                                      transcendentals=transcendentals,
                                      bytes_accessed=bytes_accessed),
    )(h_enc, xc, a_hat, w_pro, b_pro, wx_all, wh_all, b_all)


# -----------------------------------------------------------------------------
# Graph normalization glue (matches PyG gcn_norm with add_self_loops=True,
# fill_value=1.0; edge_index has no pre-existing self loops in this script)
# -----------------------------------------------------------------------------
def gcn_norm_dense(edge_index, edge_weight, num_nodes):
    src = edge_index[0]
    dst = edge_index[1]
    a = jnp.zeros((num_nodes, num_nodes), jnp.float32)
    a = a.at[dst, src].add(edge_weight)            # A[i, j] = weight of edge j -> i
    a = a + jnp.eye(num_nodes, dtype=jnp.float32)  # self loops, weight 1
    deg = jnp.sum(a, axis=1)
    d_inv_sqrt = jnp.where(deg > 0, 1.0 / jnp.sqrt(deg), 0.0)
    return d_inv_sqrt[:, None] * a * d_inv_sqrt[None, :]


# -----------------------------------------------------------------------------
# Parameter construction (deterministic, synthetic); per-step weights stacked
# over time so the fused kernels can stream them via the grid axis.
# -----------------------------------------------------------------------------
def init_params(key, input_seq_len, output_seq_len, channels, hidden_channels,
                scale=0.1):
    keys = jax.random.split(key, input_seq_len + output_seq_len + 2)
    k = 0

    enc_wx, enc_wh, enc_b = [], [], []
    for _ in range(input_seq_len):
        w = scale * jax.random.normal(
            keys[k], (channels + hidden_channels, 4 * hidden_channels),
            jnp.float32)
        k += 1
        enc_wx.append(w[:channels])
        enc_wh.append(w[channels:])
        enc_b.append(jnp.zeros((1, 4 * hidden_channels), jnp.float32))

    conv_h_w = scale * jax.random.normal(keys[k], (hidden_channels, channels),
                                         jnp.float32)
    k += 1
    conv_c_w = scale * jax.random.normal(keys[k], (hidden_channels, channels),
                                         jnp.float32)
    k += 1

    dec_wx, dec_wh, dec_b = [], [], []
    for _ in range(output_seq_len):
        w = scale * jax.random.normal(
            keys[k], (hidden_channels + channels, 4 * channels), jnp.float32)
        k += 1
        dec_wx.append(w[:hidden_channels])
        dec_wh.append(w[hidden_channels:])
        dec_b.append(jnp.zeros((1, 4 * channels), jnp.float32))

    return {
        "enc_wx": jnp.stack(enc_wx),           # (T_in, C, 4H)
        "enc_wh": jnp.stack(enc_wh),           # (T_in, H, 4H)
        "enc_b": jnp.stack(enc_b),             # (T_in, 1, 4H)
        "conv_h_w": conv_h_w,                  # (H, C)
        "conv_h_b": jnp.zeros((1, channels), jnp.float32),
        "conv_c_w": conv_c_w,                  # (H, C)
        "conv_c_b": jnp.zeros((1, channels), jnp.float32),
        "dec_wx": jnp.stack(dec_wx),           # (T_out, H, 4C)
        "dec_wh": jnp.stack(dec_wh),           # (T_out, C, 4C)
        "dec_b": jnp.stack(dec_b),             # (T_out, 1, 4C)
    }


# -----------------------------------------------------------------------------
# Full GConvLSTM forward: exactly two fused pallas_calls + JAX glue
# -----------------------------------------------------------------------------
@functools.partial(jax.jit, static_argnames=("channels", "hidden_channels"))
def gconvlstm_forward(params, x, edge_index, edge_weight, *, channels,
                      hidden_channels):
    # x: (input_seq_len, N, channels)
    num_nodes = x.shape[1]
    a_hat = gcn_norm_dense(edge_index, edge_weight, num_nodes)

    # ---- fused encoder (all input timesteps in one pallas_call) ----
    h_enc, c_enc = _run_encoder(x, a_hat, params["enc_wx"], params["enc_wh"],
                                params["enc_b"], hidden_channels)

    # ---- fused decoder (prologue convs + all output steps + leaky relu) ----
    # Block-diagonal W_pro so cat(h_enc, c_enc) @ W_pro == [h@Wh | c@Wc]:
    w_pro = jnp.zeros((2 * hidden_channels, 2 * channels), jnp.float32)
    w_pro = w_pro.at[:hidden_channels, :channels].set(params["conv_h_w"])
    w_pro = w_pro.at[hidden_channels:, channels:].set(params["conv_c_w"])
    b_pro = jnp.concatenate([params["conv_h_b"], params["conv_c_b"]], axis=1)
    xc = jnp.concatenate([h_enc, c_enc], axis=1)

    return _run_decoder(h_enc, xc, a_hat, w_pro, b_pro,
                        params["dec_wx"], params["dec_wh"], params["dec_b"],
                        channels)


# -----------------------------------------------------------------------------
if __name__ == "__main__":
    input_seq_len = 4
    output_seq_len = 3
    channels = 4
    hidden_channels = 32
    num_nodes = 16
    num_edges = 40

    key = jax.random.PRNGKey(0)
    k_x, k_src, k_dst, k_w, k_p = jax.random.split(key, 5)

    x = jax.random.normal(k_x, (input_seq_len, num_nodes, channels),
                          jnp.float32)

    src = jax.random.randint(k_src, (num_edges,), 0, num_nodes)
    dst = jax.random.randint(k_dst, (num_edges,), 0, num_nodes)
    # avoid pre-existing self loops (gcn_norm adds them with weight 1 itself)
    dst = jnp.where(dst == src, (dst + 1) % num_nodes, dst)
    edge_index = jnp.stack([src, dst], axis=0).astype(jnp.int32)
    edge_weight = jax.random.uniform(k_w, (num_edges,), jnp.float32,
                                     minval=0.5, maxval=1.5)

    params = init_params(k_p, input_seq_len, output_seq_len, channels,
                         hidden_channels)

    out = gconvlstm_forward(params, x, edge_index, edge_weight,
                            channels=channels, hidden_channels=hidden_channels)
    out = jax.block_until_ready(out)
    assert out.shape == (output_seq_len, num_nodes, channels)
    assert jnp.all(jnp.isfinite(out))
    print("KERNEL_OK")
</pallas_src>

<mosaic_0001>
module attributes {stable_mosaic.version = 11 : i64} {
  func.func @_encoder_kernel(%arg0: i32, %arg1: memref<1x16x4xf32, #tpu.memory_space<vmem>>, %arg2: memref<16x16xf32, #tpu.memory_space<vmem>>, %arg3: memref<1x4x128xf32, #tpu.memory_space<vmem>>, %arg4: memref<1x32x128xf32, #tpu.memory_space<vmem>>, %arg5: memref<1x1x128xf32, #tpu.memory_space<vmem>>, %arg6: memref<16x32xf32, #tpu.memory_space<vmem>>, %arg7: memref<16x32xf32, #tpu.memory_space<vmem>>, %arg8: memref<16x32xf32, #tpu.memory_space<vmem>>, %arg9: memref<16x32xf32, #tpu.memory_space<vmem>>) attributes {dimension_semantics = [#tpu.dimension_semantics<arbitrary>], iteration_bounds = array<i64: 4>, scalar_prefetch = 0 : i64, scratch_operands = 2 : i64, tpu.core_type = #tpu.core_type<tc>, window_params = [{transform_indices = @transform_0, window_bounds = array<i64: 1, 16, 4>}, {pipeline_mode = #tpu.pipeline_mode<synchronous>, transform_indices = @transform_1, window_bounds = array<i64: 16, 16>}, {transform_indices = @transform_2, window_bounds = array<i64: 1, 4, 128>}, {transform_indices = @transform_3, window_bounds = array<i64: 1, 32, 128>}, {transform_indices = @transform_4, window_bounds = array<i64: 1, 1, 128>}, {pipeline_mode = #tpu.pipeline_mode<synchronous>, transform_indices = @transform_5, window_bounds = array<i64: 16, 32>}, {pipeline_mode = #tpu.pipeline_mode<synchronous>, transform_indices = @transform_6, window_bounds = array<i64: 16, 32>}]} {
    %c0_i32 = arith.constant 0 : i32
    %0 = arith.cmpi eq, %arg0, %c0_i32 : i32
    %1 = arith.extui %0 : i1 to i32
    %c0_i32_0 = arith.constant 0 : i32
    %2 = arith.cmpi ne, %1, %c0_i32_0 : i32
    scf.if %2 {
      %cst_26 = arith.constant 0.000000e+00 : f32
      %40 = vector.broadcast %cst_26 : f32 to vector<16x32xf32>
      %c0_27 = arith.constant 0 : index
      %c0_28 = arith.constant 0 : index
      %41 = vector.load %arg8[%c0_27, %c0_28] : memref<16x32xf32, #tpu.memory_space<vmem>>, vector<16x32xf32>
      tpu.vector_store %arg8[%c0_27, %c0_28], %40 {strides = array<i32>} : memref<16x32xf32, #tpu.memory_space<vmem>>, vector<16x32xf32>,
      %cst_29 = arith.constant 0.000000e+00 : f32
      %42 = vector.broadcast %cst_29 : f32 to vector<16x32xf32>
      %c0_30 = arith.constant 0 : index
      %c0_31 = arith.constant 0 : index
      %43 = vector.load %arg9[%c0_30, %c0_31] : memref<16x32xf32, #tpu.memory_space<vmem>>, vector<16x32xf32>
      tpu.vector_store %arg9[%c0_30, %c0_31], %42 {strides = array<i32>} : memref<16x32xf32, #tpu.memory_space<vmem>>, vector<16x32xf32>,
    } else {
    }
    %c0 = arith.constant 0 : index
    %c0_1 = arith.constant 0 : index
    %c0_2 = arith.constant 0 : index
    %3 = vector.load %arg1[%c0, %c0_1, %c0_2] : memref<1x16x4xf32, #tpu.memory_space<vmem>>, vector<1x16x4xf32>
    %4 = vector.shape_cast %3 : vector<1x16x4xf32> to vector<16x4xf32>
    %c0_3 = arith.constant 0 : index
    %c0_4 = arith.constant 0 : index
    %c0_5 = arith.constant 0 : index
    %5 = vector.load %arg3[%c0_3, %c0_4, %c0_5] : memref<1x4x128xf32, #tpu.memory_space<vmem>>, vector<1x4x128xf32>
    %6 = vector.shape_cast %5 : vector<1x4x128xf32> to vector<4x128xf32>
    %cst = arith.constant dense<0.000000e+00> : vector<16x128xf32>
    %7 = tpu.matmul %4, %6, %cst {dimension_numbers = #tpu.dot_dimension_numbers<[1], [0], [0], [1], [0, 0, 1, 1], [], []>} : vector<16x4xf32>, vector<4x128xf32>, vector<16x128xf32> -> vector<16x128xf32>
    %c0_6 = arith.constant 0 : index
    %c0_7 = arith.constant 0 : index
    %8 = vector.load %arg8[%c0_6, %c0_7] : memref<16x32xf32, #tpu.memory_space<vmem>>, vector<16x32xf32>
    %c0_8 = arith.constant 0 : index
    %c0_9 = arith.constant 0 : index
    %c0_10 = arith.constant 0 : index
    %9 = vector.load %arg4[%c0_8, %c0_9, %c0_10] : memref<1x32x128xf32, #tpu.memory_space<vmem>>, vector<1x32x128xf32>
    %10 = vector.shape_cast %9 : vector<1x32x128xf32> to vector<32x128xf32>
    %cst_11 = arith.constant dense<0.000000e+00> : vector<16x128xf32>
    %11 = tpu.matmul %8, %10, %cst_11 {dimension_numbers = #tpu.dot_dimension_numbers<[1], [0], [0], [1], [0, 0, 1, 1], [], []>} : vector<16x32xf32>, vector<32x128xf32>, vector<16x128xf32> -> vector<16x128xf32>
    %c0_12 = arith.constant 0 : index
    %c0_13 = arith.constant 0 : index
    %12 = vector.load %arg2[%c0_12, %c0_13] : memref<16x16xf32, #tpu.memory_space<vmem>>, vector<16x16xf32>
    %13 = arith.addf %7, %11 : vector<16x128xf32>
    %cst_14 = arith.constant dense<0.000000e+00> : vector<16x128xf32>
    %14 = tpu.matmul %12, %13, %cst_14 {dimension_numbers = #tpu.dot_dimension_numbers<[1], [0], [0], [1], [0, 0, 1, 1], [], []>} : vector<16x16xf32>, vector<16x128xf32>, vector<16x128xf32> -> vector<16x128xf32>
    %c0_15 = arith.constant 0 : index
    %c0_16 = arith.constant 0 : index
    %c0_17 = arith.constant 0 : index
    %15 = vector.load %arg5[%c0_15, %c0_16, %c0_17] : memref<1x1x128xf32, #tpu.memory_space<vmem>>, vector<1x1x128xf32>
    %16 = vector.shape_cast %15 : vector<1x1x128xf32> to vector<1x128xf32>
    %17 = vector.broadcast %16 : vector<1x128xf32> to vector<16x128xf32>
    %18 = arith.addf %14, %17 : vector<16x128xf32>
    %19 = arith.negf %18 : vector<16x128xf32>
    %20 = math.exp %19 : vector<16x128xf32>
    %cst_18 = arith.constant 1.000000e+00 : f32
    %21 = vector.broadcast %cst_18 : f32 to vector<16x128xf32>
    %22 = arith.addf %21, %20 : vector<16x128xf32>
    %23 = arith.divf %21, %22 : vector<16x128xf32>
    %24 = math.tanh %18 : vector<16x128xf32>
    %25 = vector.extract_strided_slice %23 {offsets = [0, 0], sizes = [16, 32], strides = [1, 1]} : vector<16x128xf32> to vector<16x32xf32>
    %26 = vector.extract_strided_slice %23 {offsets = [0, 32], sizes = [16, 32], strides = [1, 1]} : vector<16x128xf32> to vector<16x32xf32>
    %27 = vector.extract_strided_slice %23 {offsets = [0, 64], sizes = [16, 32], strides = [1, 1]} : vector<16x128xf32> to vector<16x32xf32>
    %28 = vector.extract_strided_slice %24 {offsets = [0, 96], sizes = [16, 32], strides = [1, 1]} : vector<16x128xf32> to vector<16x32xf32>
    %c0_19 = arith.constant 0 : index
    %c0_20 = arith.constant 0 : index
    %29 = vector.load %arg9[%c0_19, %c0_20] : memref<16x32xf32, #tpu.memory_space<vmem>>, vector<16x32xf32>
    %30 = arith.mulf %25, %29 : vector<16x32xf32>
    %31 = arith.mulf %26, %28 : vector<16x32xf32>
    %32 = arith.addf %30, %31 : vector<16x32xf32>
    %33 = math.tanh %32 : vector<16x32xf32>
    %34 = arith.mulf %27, %33 : vector<16x32xf32>
    %c0_21 = arith.constant 0 : index
    %c0_22 = arith.constant 0 : index
    %35 = vector.load %arg8[%c0_21, %c0_22] : memref<16x32xf32, #tpu.memory_space<vmem>>, vector<16x32xf32>
    tpu.vector_store %arg8[%c0_21, %c0_22], %34 {strides = array<i32>} : memref<16x32xf32, #tpu.memory_space<vmem>>, vector<16x32xf32>,
    %c0_23 = arith.constant 0 : index
    %c0_24 = arith.constant 0 : index
    %36 = vector.load %arg9[%c0_23, %c0_24] : memref<16x32xf32, #tpu.memory_space<vmem>>, vector<16x32xf32>
    tpu.vector_store %arg9[%c0_23, %c0_24], %32 {strides = array<i32>} : memref<16x32xf32, #tpu.memory_space<vmem>>, vector<16x32xf32>,
    %c3_i32 = arith.constant 3 : i32
    %37 = arith.cmpi eq, %arg0, %c3_i32 : i32
    %38 = arith.extui %37 : i1 to i32
    %c0_i32_25 = arith.constant 0 : i32
    %39 = arith.cmpi ne, %38, %c0_i32_25 : i32
    scf.if %39 {
      %c0_26 = arith.constant 0 : index
      %c0_27 = arith.constant 0 : index
      %40 = vector.load %arg6[%c0_26, %c0_27] : memref<16x32xf32, #tpu.memory_space<vmem>>, vector<16x32xf32>
      tpu.vector_store %arg6[%c0_26, %c0_27], %34 {strides = array<i32>} : memref<16x32xf32, #tpu.memory_space<vmem>>, vector<16x32xf32>,
      %c0_28 = arith.constant 0 : index
      %c0_29 = arith.constant 0 : index
      %41 = vector.load %arg7[%c0_28, %c0_29] : memref<16x32xf32, #tpu.memory_space<vmem>>, vector<16x32xf32>
      tpu.vector_store %arg7[%c0_28, %c0_29], %32 {strides = array<i32>} : memref<16x32xf32, #tpu.memory_space<vmem>>, vector<16x32xf32>,
    } else {
    }
    return
  }
  func.func @transform_0(%arg0: i32) -> (i32, i32, i32) {
    %c0_i32 = arith.constant 0 : i32
    %c0_i32_0 = arith.constant 0 : i32
    %c0_i32_1 = arith.constant 0 : i32
    return %arg0, %c0_i32, %c0_i32_0 : i32, i32, i32
  }
  func.func @transform_1(%arg0: i32) -> (i32, i32) {
    %c0_i32 = arith.constant 0 : i32
    %c0_i32_0 = arith.constant 0 : i32
    %c0_i32_1 = arith.constant 0 : i32
    return %c0_i32, %c0_i32_0 : i32, i32
  }
  func.func @transform_2(%arg0: i32) -> (i32, i32, i32) {
    %c0_i32 = arith.constant 0 : i32
    %c0_i32_0 = arith.constant 0 : i32
    %c0_i32_1 = arith.constant 0 : i32
    return %arg0, %c0_i32, %c0_i32_0 : i32, i32, i32
  }
  func.func @transform_3(%arg0: i32) -> (i32, i32, i32) {
    %c0_i32 = arith.constant 0 : i32
    %c0_i32_0 = arith.constant 0 : i32
    %c0_i32_1 = arith.constant 0 : i32
    return %arg0, %c0_i32, %c0_i32_0 : i32, i32, i32
  }
  func.func @transform_4(%arg0: i32) -> (i32, i32, i32) {
    %c0_i32 = arith.constant 0 : i32
    %c0_i32_0 = arith.constant 0 : i32
    %c0_i32_1 = arith.constant 0 : i32
    return %arg0, %c0_i32, %c0_i32_0 : i32, i32, i32
  }
  func.func @transform_5(%arg0: i32) -> (i32, i32) {
    %c0_i32 = arith.constant 0 : i32
    %c0_i32_0 = arith.constant 0 : i32
    %c0_i32_1 = arith.constant 0 : i32
    return %c0_i32, %c0_i32_0 : i32, i32
  }
  func.func @transform_6(%arg0: i32) -> (i32, i32) {
    %c0_i32 = arith.constant 0 : i32
    %c0_i32_0 = arith.constant 0 : i32
    %c0_i32_1 = arith.constant 0 : i32
    return %c0_i32, %c0_i32_0 : i32, i32
  }
}

module attributes {stable_mosaic.version = 11 : i64} {
  func.func @_decoder_kernel(%arg0: i32, %arg1: memref<16x32xf32, #tpu.memory_space<vmem>>, %arg2: memref<16x64xf32, #tpu.memory_space<vmem>>, %arg3: memref<16x16xf32, #tpu.memory_space<vmem>>, %arg4: memref<64x8xf32, #tpu.memory_space<vmem>>, %arg5: memref<1x8xf32, #tpu.memory_space<vmem>>, %arg6: memref<1x32x16xf32, #tpu.memory_space<vmem>>, %arg7: memref<1x4x16xf32, #tpu.memory_space<vmem>>, %arg8: memref<1x1x16xf32, #tpu.memory_space<vmem>>, %arg9: memref<3x16x4xf32, #tpu.memory_space<vmem>>, %arg10: memref<16x4xf32, #tpu.memory_space<vmem>>, %arg11: memref<16x4xf32, #tpu.memory_space<vmem>>) attributes {dimension_semantics = [#tpu.dimension_semantics<arbitrary>], iteration_bounds = array<i64: 3>, scalar_prefetch = 0 : i64, scratch_operands = 2 : i64, tpu.core_type = #tpu.core_type<tc>, window_params = [{pipeline_mode = #tpu.pipeline_mode<synchronous>, transform_indices = @transform_0, window_bounds = array<i64: 16, 32>}, {pipeline_mode = #tpu.pipeline_mode<synchronous>, transform_indices = @transform_1, window_bounds = array<i64: 16, 64>}, {pipeline_mode = #tpu.pipeline_mode<synchronous>, transform_indices = @transform_2, window_bounds = array<i64: 16, 16>}, {pipeline_mode = #tpu.pipeline_mode<synchronous>, transform_indices = @transform_3, window_bounds = array<i64: 64, 8>}, {pipeline_mode = #tpu.pipeline_mode<synchronous>, transform_indices = @transform_4, window_bounds = array<i64: 1, 8>}, {transform_indices = @transform_5, window_bounds = array<i64: 1, 32, 16>}, {transform_indices = @transform_6, window_bounds = array<i64: 1, 4, 16>}, {transform_indices = @transform_7, window_bounds = array<i64: 1, 1, 16>}, {pipeline_mode = #tpu.pipeline_mode<synchronous>, transform_indices = @transform_8, window_bounds = array<i64: 3, 16, 4>}]} {
    %c0_i32 = arith.constant 0 : i32
    %0 = arith.cmpi eq, %arg0, %c0_i32 : i32
    %1 = arith.extui %0 : i1 to i32
    %c0_i32_0 = arith.constant 0 : i32
    %2 = arith.cmpi ne, %1, %c0_i32_0 : i32
    scf.if %2 {
      %c0_28 = arith.constant 0 : index
      %c0_29 = arith.constant 0 : index
      %45 = vector.load %arg3[%c0_28, %c0_29] : memref<16x16xf32, #tpu.memory_space<vmem>>, vector<16x16xf32>
      %c0_30 = arith.constant 0 : index
      %c0_31 = arith.constant 0 : index
      %46 = vector.load %arg2[%c0_30, %c0_31] : memref<16x64xf32, #tpu.memory_space<vmem>>, vector<16x64xf32>
      %c0_32 = arith.constant 0 : index
      %c0_33 = arith.constant 0 : index
      %47 = vector.load %arg4[%c0_32, %c0_33] : memref<64x8xf32, #tpu.memory_space<vmem>>, vector<64x8xf32>
      %cst_34 = arith.constant dense<0.000000e+00> : vector<16x8xf32>
      %48 = tpu.matmul %46, %47, %cst_34 {dimension_numbers = #tpu.dot_dimension_numbers<[1], [0], [0], [1], [0, 0, 1, 1], [], []>} : vector<16x64xf32>, vector<64x8xf32>, vector<16x8xf32> -> vector<16x8xf32>
      %cst_35 = arith.constant dense<0.000000e+00> : vector<16x8xf32>
      %49 = tpu.matmul %45, %48, %cst_35 {dimension_numbers = #tpu.dot_dimension_numbers<[1], [0], [0], [1], [0, 0, 1, 1], [], []>} : vector<16x16xf32>, vector<16x8xf32>, vector<16x8xf32> -> vector<16x8xf32>
      %c0_36 = arith.constant 0 : index
      %c0_37 = arith.constant 0 : index
      %50 = vector.load %arg5[%c0_36, %c0_37] : memref<1x8xf32, #tpu.memory_space<vmem>>, vector<1x8xf32>
      %51 = vector.broadcast %50 : vector<1x8xf32> to vector<16x8xf32>
      %52 = arith.addf %49, %51 : vector<16x8xf32>
      %53 = vector.extract_strided_slice %52 {offsets = [0, 0], sizes = [16, 4], strides = [1, 1]} : vector<16x8xf32> to vector<16x4xf32>
      %c0_38 = arith.constant 0 : index
      %c0_39 = arith.constant 0 : index
      %54 = vector.load %arg10[%c0_38, %c0_39] : memref<16x4xf32, #tpu.memory_space<vmem>>, vector<16x4xf32>
      tpu.vector_store %arg10[%c0_38, %c0_39], %53 {strides = array<i32>} : memref<16x4xf32, #tpu.memory_space<vmem>>, vector<16x4xf32>,
      %55 = vector.extract_strided_slice %52 {offsets = [0, 4], sizes = [16, 4], strides = [1, 1]} : vector<16x8xf32> to vector<16x4xf32>
      %c0_40 = arith.constant 0 : index
      %c0_41 = arith.constant 0 : index
      %56 = vector.load %arg11[%c0_40, %c0_41] : memref<16x4xf32, #tpu.memory_space<vmem>>, vector<16x4xf32>
      tpu.vector_store %arg11[%c0_40, %c0_41], %55 {strides = array<i32>} : memref<16x4xf32, #tpu.memory_space<vmem>>, vector<16x4xf32>,
    } else {
    }
    %c0 = arith.constant 0 : index
    %c0_1 = arith.constant 0 : index
    %3 = vector.load %arg1[%c0, %c0_1] : memref<16x32xf32, #tpu.memory_space<vmem>>, vector<16x32xf32>
    %c0_2 = arith.constant 0 : index
    %c0_3 = arith.constant 0 : index
    %c0_4 = arith.constant 0 : index
    %4 = vector.load %arg6[%c0_2, %c0_3, %c0_4] : memref<1x32x16xf32, #tpu.memory_space<vmem>>, vector<1x32x16xf32>
    %5 = vector.shape_cast %4 : vector<1x32x16xf32> to vector<32x16xf32>
    %cst = arith.constant dense<0.000000e+00> : vector<16x16xf32>
    %6 = tpu.matmul %3, %5, %cst {dimension_numbers = #tpu.dot_dimension_numbers<[1], [0], [0], [1], [0, 0, 1, 1], [], []>} : vector<16x32xf32>, vector<32x16xf32>, vector<16x16xf32> -> vector<16x16xf32>
    %c0_5 = arith.constant 0 : index
    %c0_6 = arith.constant 0 : index
    %7 = vector.load %arg10[%c0_5, %c0_6] : memref<16x4xf32, #tpu.memory_space<vmem>>, vector<16x4xf32>
    %c0_7 = arith.constant 0 : index
    %c0_8 = arith.constant 0 : index
    %c0_9 = arith.constant 0 : index
    %8 = vector.load %arg7[%c0_7, %c0_8, %c0_9] : memref<1x4x16xf32, #tpu.memory_space<vmem>>, vector<1x4x16xf32>
    %9 = vector.shape_cast %8 : vector<1x4x16xf32> to vector<4x16xf32>
    %cst_10 = arith.constant dense<0.000000e+00> : vector<16x16xf32>
    %10 = tpu.matmul %7, %9, %cst_10 {dimension_numbers = #tpu.dot_dimension_numbers<[1], [0], [0], [1], [0, 0, 1, 1], [], []>} : vector<16x4xf32>, vector<4x16xf32>, vector<16x16xf32> -> vector<16x16xf32>
    %c0_11 = arith.constant 0 : index
    %c0_12 = arith.constant 0 : index
    %11 = vector.load %arg3[%c0_11, %c0_12] : memref<16x16xf32, #tpu.memory_space<vmem>>, vector<16x16xf32>
    %12 = arith.addf %6, %10 : vector<16x16xf32>
    %cst_13 = arith.constant dense<0.000000e+00> : vector<16x16xf32>
    %13 = tpu.matmul %11, %12, %cst_13 {dimension_numbers = #tpu.dot_dimension_numbers<[1], [0], [0], [1], [0, 0, 1, 1], [], []>} : vector<16x16xf32>, vector<16x16xf32>, vector<16x16xf32> -> vector<16x16xf32>
    %c0_14 = arith.constant 0 : index
    %c0_15 = arith.constant 0 : index
    %c0_16 = arith.constant 0 : index
    %14 = vector.load %arg8[%c0_14, %c0_15, %c0_16] : memref<1x1x16xf32, #tpu.memory_space<vmem>>, vector<1x1x16xf32>
    %15 = vector.shape_cast %14 : vector<1x1x16xf32> to vector<1x16xf32>
    %16 = vector.broadcast %15 : vector<1x16xf32> to vector<16x16xf32>
    %17 = arith.addf %13, %16 : vector<16x16xf32>
    %18 = arith.negf %17 : vector<16x16xf32>
    %19 = math.exp %18 : vector<16x16xf32>
    %cst_17 = arith.constant 1.000000e+00 : f32
    %20 = vector.broadcast %cst_17 : f32 to vector<16x16xf32>
    %21 = arith.addf %20, %19 : vector<16x16xf32>
    %22 = arith.divf %20, %21 : vector<16x16xf32>
    %23 = math.tanh %17 : vector<16x16xf32>
    %24 = vector.extract_strided_slice %22 {offsets = [0, 0], sizes = [16, 4], strides = [1, 1]} : vector<16x16xf32> to vector<16x4xf32>
    %25 = vector.extract_strided_slice %22 {offsets = [0, 4], sizes = [16, 4], strides = [1, 1]} : vector<16x16xf32> to vector<16x4xf32>
    %26 = vector.extract_strided_slice %22 {offsets = [0, 8], sizes = [16, 4], strides = [1, 1]} : vector<16x16xf32> to vector<16x4xf32>
    %27 = vector.extract_strided_slice %23 {offsets = [0, 12], sizes = [16, 4], strides = [1, 1]} : vector<16x16xf32> to vector<16x4xf32>
    %c0_18 = arith.constant 0 : index
    %c0_19 = arith.constant 0 : index
    %28 = vector.load %arg11[%c0_18, %c0_19] : memref<16x4xf32, #tpu.memory_space<vmem>>, vector<16x4xf32>
    %29 = arith.mulf %24, %28 : vector<16x4xf32>
    %30 = arith.mulf %25, %27 : vector<16x4xf32>
    %31 = arith.addf %29, %30 : vector<16x4xf32>
    %32 = math.tanh %31 : vector<16x4xf32>
    %33 = arith.mulf %26, %32 : vector<16x4xf32>
    %c0_20 = arith.constant 0 : index
    %c0_21 = arith.constant 0 : index
    %34 = vector.load %arg10[%c0_20, %c0_21] : memref<16x4xf32, #tpu.memory_space<vmem>>, vector<16x4xf32>
    tpu.vector_store %arg10[%c0_20, %c0_21], %33 {strides = array<i32>} : memref<16x4xf32, #tpu.memory_space<vmem>>, vector<16x4xf32>,
    %c0_22 = arith.constant 0 : index
    %c0_23 = arith.constant 0 : index
    %35 = vector.load %arg11[%c0_22, %c0_23] : memref<16x4xf32, #tpu.memory_space<vmem>>, vector<16x4xf32>
    tpu.vector_store %arg11[%c0_22, %c0_23], %31 {strides = array<i32>} : memref<16x4xf32, #tpu.memory_space<vmem>>, vector<16x4xf32>,
    %cst_24 = arith.constant 0.000000e+00 : f32
    %36 = vector.broadcast %cst_24 : f32 to vector<16x4xf32>
    %37 = arith.cmpf oge, %33, %36 : vector<16x4xf32>
    %cst_25 = arith.constant 0.00999999977 : f32
    %38 = vector.broadcast %cst_25 : f32 to vector<16x4xf32>
    %39 = arith.mulf %38, %33 : vector<16x4xf32>
    %40 = arith.select %37, %33, %39 : vector<16x4xi1>, vector<16x4xf32>
    %41 = arith.index_cast %arg0 : i32 to index
    %c0_26 = arith.constant 0 : index
    %c0_27 = arith.constant 0 : index
    %42 = vector.load %arg9[%41, %c0_26, %c0_27] : memref<3x16x4xf32, #tpu.memory_space<vmem>>, vector<1x16x4xf32>
    %43 = vector.shape_cast %42 : vector<1x16x4xf32> to vector<16x4xf32>
    %44 = vector.shape_cast %40 : vector<16x4xf32> to vector<1x16x4xf32>
    tpu.vector_store %arg9[%41, %c0_26, %c0_27], %44 {strides = array<i32>} : memref<3x16x4xf32, #tpu.memory_space<vmem>>, vector<1x16x4xf32>,
    return
  }
  func.func @transform_0(%arg0: i32) -> (i32, i32) {
    %c0_i32 = arith.constant 0 : i32
    %c0_i32_0 = arith.constant 0 : i32
    %c0_i32_1 = arith.constant 0 : i32
    return %c0_i32, %c0_i32_0 : i32, i32
  }
  func.func @transform_1(%arg0: i32) -> (i32, i32) {
    %c0_i32 = arith.constant 0 : i32
    %c0_i32_0 = arith.constant 0 : i32
    %c0_i32_1 = arith.constant 0 : i32
    return %c0_i32, %c0_i32_0 : i32, i32
  }
  func.func @transform_2(%arg0: i32) -> (i32, i32) {
    %c0_i32 = arith.constant 0 : i32
    %c0_i32_0 = arith.constant 0 : i32
    %c0_i32_1 = arith.constant 0 : i32
    return %c0_i32, %c0_i32_0 : i32, i32
  }
  func.func @transform_3(%arg0: i32) -> (i32, i32) {
    %c0_i32 = arith.constant 0 : i32
    %c0_i32_0 = arith.constant 0 : i32
    %c0_i32_1 = arith.constant 0 : i32
    return %c0_i32, %c0_i32_0 : i32, i32
  }
  func.func @transform_4(%arg0: i32) -> (i32, i32) {
    %c0_i32 = arith.constant 0 : i32
    %c0_i32_0 = arith.constant 0 : i32
    %c0_i32_1 = arith.constant 0 : i32
    return %c0_i32, %c0_i32_0 : i32, i32
  }
  func.func @transform_5(%arg0: i32) -> (i32, i32, i32) {
    %c0_i32 = arith.constant 0 : i32
    %c0_i32_0 = arith.constant 0 : i32
    %c0_i32_1 = arith.constant 0 : i32
    return %arg0, %c0_i32, %c0_i32_0 : i32, i32, i32
  }
  func.func @transform_6(%arg0: i32) -> (i32, i32, i32) {
    %c0_i32 = arith.constant 0 : i32
    %c0_i32_0 = arith.constant 0 : i32
    %c0_i32_1 = arith.constant 0 : i32
    return %arg0, %c0_i32, %c0_i32_0 : i32, i32, i32
  }
  func.func @transform_7(%arg0: i32) -> (i32, i32, i32) {
    %c0_i32 = arith.constant 0 : i32
    %c0_i32_0 = arith.constant 0 : i32
    %c0_i32_1 = arith.constant 0 : i32
    return %arg0, %c0_i32, %c0_i32_0 : i32, i32, i32
  }
  func.func @transform_8(%arg0: i32) -> (i32, i32, i32) {
    %c0_i32 = arith.constant 0 : i32
    %c0_i32_0 = arith.constant 0 : i32
    %c0_i32_1 = arith.constant 0 : i32
    %c0_i32_2 = arith.constant 0 : i32
    return %c0_i32, %c0_i32_0, %c0_i32_1 : i32, i32, i32
  }
}

</mosaic_0001>

<llo_original>
// kernel: gconvlstm_forward.3
$region0: #{gconvlstm_forward.3}
  #allocation0 [shape = 'u32[]', space=smem, size = 0x4, offset = 0x4, fixed_abs, tag = 'smem constant byte address 0x4 - core index']
  #allocation1 [shape = 'u32[144,128]{1,0:T(1,128)}', space=vmem, size = 0x12000, scoped, tag = 'internal scratch']
  #allocation2 [shape = 'f32[16,4]{1,0:T(8,128)}', space=vmem, size = 0x2000, scoped, tag = 'scratch operand']
  #allocation3 [shape = 'f32[16,4]{1,0:T(8,128)}', space=vmem, size = 0x2000, scoped, tag = 'scratch operand']
  %s0 = inlined_call_operand.vmem [shape: f32[16,32], index: 0, kind: input, shape index: {}]
  %s1 = inlined_call_operand.vmem [shape: f32[16,64], index: 1, kind: input, shape index: {}]
  %s2 = inlined_call_operand.vmem [shape: f32[16,16], index: 2, kind: input, shape index: {}]
  %s3 = inlined_call_operand.vmem [shape: f32[64,8], index: 3, kind: input, shape index: {}]
  %s4 = inlined_call_operand.vmem [shape: f32[1,8], index: 4, kind: input, shape index: {}]
  %s5 = inlined_call_operand.vmem [shape: f32[3,32,16], index: 5, kind: input, shape index: {}]
  %s6 = inlined_call_operand.vmem [shape: f32[3,4,16], index: 6, kind: input, shape index: {}]
  %s7 = inlined_call_operand.vmem [shape: f32[3,1,16], index: 7, kind: input, shape index: {}]
  %s8 = inlined_call_operand.vmem [shape: f32[3,16,4], index: 8, kind: output, shape index: {}]
  %s9 = sld [smem:[#allocation0]]
  $region69: #{gconvlstm_forward.3} parent=0
    _
  %s11 = ssub.s32 1, %s9
  %s12 = scalar_select 0, %s11, %s9
  loop: start=0, step=1, limit=5
  $region2: #{gconvlstm_forward.3} parent=0 // loop_pre_header
    _
  $region3: #{gconvlstm_forward.3} parent=0 // loop_header
    %s14 = sphi 0, %s18
    %p15 = scmp.ge.s32.totalorder %s14, 5
    %s22 = sphi 0, %s22
    %s24 = sphi 0, %s22
    %s25 = sphi 0, %s24
    %s39 = sphi 0, %s25
    %s43 = sphi 0, %s43
    %s45 = sphi 0, %s43
    %s46 = sphi 0, %s45
    %s60 = sphi 0, %s46
    %s64 = sphi 0, %s64
    %s66 = sphi 0, %s64
    %s67 = sphi 0, %s66
    %s81 = sphi 0, %s67
    %s85 = sphi 0, %s85
    %s87 = sphi 0, %s85
    %s88 = sphi 0, %s87
    %s102 = sphi 0, %s88
    %s106 = sphi 0, %s106
    %s108 = sphi 0, %s106
    %s109 = sphi 0, %s108
    %s123 = sphi 0, %s109
    %s129 = sphi 0, %s131
    %s132 = sphi 0, %s129
    %s133 = sphi 0, %s132
    %s149 = sphi 0, %s133
    %s155 = sphi 0, %s157
    %s158 = sphi 0, %s155
    %s159 = sphi 0, %s158
    %s175 = sphi 0, %s159
    %s181 = sphi 0, %s183
    %s184 = sphi 0, %s181
    %s185 = sphi 0, %s184
    %s201 = sphi 0, %s185
    %s205 = sphi 0, %s205
    %s207 = sphi 0, %s205
    %s208 = sphi 0, %s207
    %s222 = sphi 0, %s208
  $region4: #{gconvlstm_forward.3} parent=0 // loop_header_branch
    %17 = sbr.rel (%p15) target = $region8
  $region5: #{gconvlstm_forward.3} parent=0 // loop_body
    %s19 = ssub.s32 %s14, 1
    %s20 = ssub.s32 %s14, 2
    %s21 = sadd.s32 %s14, 1
    %s23 = sadd.s32 %s22, 1
    %p26 = scmp.eq.s32.totalorder %s14, 2
    %p27 = scmp.ne.s32.totalorder %s22, %s24
    %p28 = scmp.eq.s32.totalorder %s14, 0
    %p29 = por %p27, %p28
    %p30 = scmp.ne.s32.totalorder %s22, %s24
    %p31 = scmp.eq.s32.totalorder %s19, 2
    %p32 = por %p30, %p31
    %p33 = scmp.ne.s32.totalorder %s24, %s25
    %p34 = scmp.eq.s32.totalorder %s19, 0
    %p35 = por %p33, %p34
    %p36 = scmp.ne.s32.totalorder %s24, %s25
    %p37 = scmp.eq.s32.totalorder %s20, 2
    %p38 = por %p36, %p37
    %p40 = scmp.ne.s32.totalorder %s25, %s39
    %p41 = scmp.eq.s32.totalorder %s20, 0
    %p42 = por %p40, %p41
    %s44 = sadd.s32 %s43, 1
    %p47 = scmp.eq.s32.totalorder %s14, 2
    %p48 = scmp.ne.s32.totalorder %s43, %s45
    %p49 = scmp.eq.s32.totalorder %s14, 0
    %p50 = por %p48, %p49
    %p51 = scmp.ne.s32.totalorder %s43, %s45
    %p52 = scmp.eq.s32.totalorder %s19, 2
    %p53 = por %p51, %p52
    %p54 = scmp.ne.s32.totalorder %s45, %s46
    %p55 = scmp.eq.s32.totalorder %s19, 0
    %p56 = por %p54, %p55
    %p57 = scmp.ne.s32.totalorder %s45, %s46
    %p58 = scmp.eq.s32.totalorder %s20, 2
    %p59 = por %p57, %p58
    %p61 = scmp.ne.s32.totalorder %s46, %s60
    %p62 = scmp.eq.s32.totalorder %s20, 0
    %p63 = por %p61, %p62
    %s65 = sadd.s32 %s64, 1
    %p68 = scmp.eq.s32.totalorder %s14, 2
    %p69 = scmp.ne.s32.totalorder %s64, %s66
    %p70 = scmp.eq.s32.totalorder %s14, 0
    %p71 = por %p69, %p70
    %p72 = scmp.ne.s32.totalorder %s64, %s66
    %p73 = scmp.eq.s32.totalorder %s19, 2
    %p74 = por %p72, %p73
    %p75 = scmp.ne.s32.totalorder %s66, %s67
    %p76 = scmp.eq.s32.totalorder %s19, 0
    %p77 = por %p75, %p76
    %p78 = scmp.ne.s32.totalorder %s66, %s67
    %p79 = scmp.eq.s32.totalorder %s20, 2
    %p80 = por %p78, %p79
    %p82 = scmp.ne.s32.totalorder %s67, %s81
    %p83 = scmp.eq.s32.totalorder %s20, 0
    %p84 = por %p82, %p83
    %s86 = sadd.s32 %s85, 1
    %p89 = scmp.eq.s32.totalorder %s14, 2
    %p90 = scmp.ne.s32.totalorder %s85, %s87
    %p91 = scmp.eq.s32.totalorder %s14, 0
    %p92 = por %p90, %p91
    %p93 = scmp.ne.s32.totalorder %s85, %s87
    %p94 = scmp.eq.s32.totalorder %s19, 2
    %p95 = por %p93, %p94
    %p96 = scmp.ne.s32.totalorder %s87, %s88
    %p97 = scmp.eq.s32.totalorder %s19, 0
    %p98 = por %p96, %p97
    %p99 = scmp.ne.s32.totalorder %s87, %s88
    %p100 = scmp.eq.s32.totalorder %s20, 2
    %p101 = por %p99, %p100
    %p103 = scmp.ne.s32.totalorder %s88, %s102
    %p104 = scmp.eq.s32.totalorder %s20, 0
    %p105 = por %p103, %p104
    %s107 = sadd.s32 %s106, 1
    %p110 = scmp.eq.s32.totalorder %s14, 2
    %p111 = scmp.ne.s32.totalorder %s106, %s108
    %p112 = scmp.eq.s32.totalorder %s14, 0
    %p113 = por %p111, %p112
    %p114 = scmp.ne.s32.totalorder %s106, %s108
    %p115 = scmp.eq.s32.totalorder %s19, 2
    %p116 = por %p114, %p115
    %p117 = scmp.ne.s32.totalorder %s108, %s109
    %p118 = scmp.eq.s32.totalorder %s19, 0
    %p119 = por %p117, %p118
    %p120 = scmp.ne.s32.totalorder %s108, %s109
    %p121 = scmp.eq.s32.totalorder %s20, 2
    %p122 = por %p120, %p121
    %p124 = scmp.ne.s32.totalorder %s109, %s123
    %p125 = scmp.eq.s32.totalorder %s20, 0
    %p126 = por %p124, %p125
    %s127 = ssub.s32 %s14, %s21
    %p128 = scmp.eq.s32.totalorder %s127, 0
    %s130 = sadd.s32 %s129, 1
    %s131 = scalar_select %p128, %s129, %s130
    %p134 = pneg %p128
    %p135 = scmp.eq.s32.totalorder %s14, 2
    %p136 = por %p134, %p135
    %p137 = scmp.ne.s32.totalorder %s129, %s132
    %p138 = scmp.eq.s32.totalorder %s14, 0
    %p139 = por %p137, %p138
    %p140 = scmp.ne.s32.totalorder %s129, %s132
    %p141 = scmp.eq.s32.totalorder %s19, 2
    %p142 = por %p140, %p141
    %p143 = scmp.ne.s32.totalorder %s132, %s133
    %p144 = scmp.eq.s32.totalorder %s19, 0
    %p145 = por %p143, %p144
    %p146 = scmp.ne.s32.totalorder %s132, %s133
    %p147 = scmp.eq.s32.totalorder %s20, 2
    %p148 = por %p146, %p147
    %p150 = scmp.ne.s32.totalorder %s133, %s149
    %p151 = scmp.eq.s32.totalorder %s20, 0
    %p152 = por %p150, %p151
    %s153 = ssub.s32 %s14, %s21
    %p154 = scmp.eq.s32.totalorder %s153, 0
    %s156 = sadd.s32 %s155, 1
    %s157 = scalar_select %p154, %s155, %s156
    %p160 = pneg %p154
    %p161 = scmp.eq.s32.totalorder %s14, 2
    %p162 = por %p160, %p161
    %p163 = scmp.ne.s32.totalorder %s155, %s158
    %p164 = scmp.eq.s32.totalorder %s14, 0
    %p165 = por %p163, %p164
    %p166 = scmp.ne.s32.totalorder %s155, %s158
    %p167 = scmp.eq.s32.totalorder %s19, 2
    %p168 = por %p166, %p167
    %p169 = scmp.ne.s32.totalorder %s158, %s159
    %p170 = scmp.eq.s32.totalorder %s19, 0
    %p171 = por %p169, %p170
    %p172 = scmp.ne.s32.totalorder %s158, %s159
    %p173 = scmp.eq.s32.totalorder %s20, 2
    %p174 = por %p172, %p173
    %p176 = scmp.ne.s32.totalorder %s159, %s175
    %p177 = scmp.eq.s32.totalorder %s20, 0
    %p178 = por %p176, %p177
    %s179 = ssub.s32 %s14, %s21
    %p180 = scmp.eq.s32.totalorder %s179, 0
    %s182 = sadd.s32 %s181, 1
    %s183 = scalar_select %p180, %s181, %s182
    %p186 = pneg %p180
    %p187 = scmp.eq.s32.totalorder %s14, 2
    %p188 = por %p186, %p187
    %p189 = scmp.ne.s32.totalorder %s181, %s184
    %p190 = scmp.eq.s32.totalorder %s14, 0
    %p191 = por %p189, %p190
    %p192 = scmp.ne.s32.totalorder %s181, %s184
    %p193 = scmp.eq.s32.totalorder %s19, 2
    %p194 = por %p192, %p193
    %p195 = scmp.ne.s32.totalorder %s184, %s185
    %p196 = scmp.eq.s32.totalorder %s19, 0
    %p197 = por %p195, %p196
    %p198 = scmp.ne.s32.totalorder %s184, %s185
    %p199 = scmp.eq.s32.totalorder %s20, 2
    %p200 = por %p198, %p199
    %p202 = scmp.ne.s32.totalorder %s185, %s201
    %p203 = scmp.eq.s32.totalorder %s20, 0
    %p204 = por %p202, %p203
    %s206 = sadd.s32 %s205, 1
    %p209 = scmp.eq.s32.totalorder %s14, 2
    %p210 = scmp.ne.s32.totalorder %s205, %s207
    %p211 = scmp.eq.s32.totalorder %s14, 0
    %p212 = por %p210, %p211
    %p213 = scmp.ne.s32.totalorder %s205, %s207
    %p214 = scmp.eq.s32.totalorder %s19, 2
    %p215 = por %p213, %p214
    %p216 = scmp.ne.s32.totalorder %s207, %s208
    %p217 = scmp.eq.s32.totalorder %s19, 0
    %p218 = por %p216, %p217
    %p219 = scmp.ne.s32.totalorder %s207, %s208
    %p220 = scmp.eq.s32.totalorder %s20, 2
    %p221 = por %p219, %p220
    %p223 = scmp.ne.s32.totalorder %s208, %s222
    %p224 = scmp.eq.s32.totalorder %s20, 0
    %p225 = por %p223, %p224
    %p226 = scmp.le.s32.totalorder 1, %s14
    %p227 = scmp.lt.s32.totalorder %s14, 4
    %p228 = pnand %p226, %p227
    %p229 = pneg %p228
    // Predicated region
    $region9: #{gconvlstm_forward.3} parent=5 // pred_check
      _
    $region10: #{gconvlstm_forward.3} parent=5 // pred_check_branch
      %231 = sbr.rel (%p228) target = $region12
    $region11: #{gconvlstm_forward.3} parent=5 // pred_region
      %s232 = ssub.s32 %s14, 1
      // Predicated region
      $region13: #{gconvlstm_forward.3} parent=11 // pred_check
        %p233 = pneg %p35
      $region14: #{gconvlstm_forward.3} parent=11 // pred_check_branch
        %235 = sbr.rel (%p233) target = $region16
      $region15: #{gconvlstm_forward.3} parent=11 // pred_region
        _
      $region16: #{gconvlstm_forward.3} parent=11 // pred_fallthru
        _
      // Predicated region
      $region17: #{gconvlstm_forward.3} parent=11 // pred_check
        %p236 = pneg %p56
      $region18: #{gconvlstm_forward.3} parent=11 // pred_check_branch
        %238 = sbr.rel (%p236) target = $region20
      $region19: #{gconvlstm_forward.3} parent=11 // pred_region
        _
      $region20: #{gconvlstm_forward.3} parent=11 // pred_fallthru
        _
      // Predicated region
      $region21: #{gconvlstm_forward.3} parent=11 // pred_check
        %p239 = pneg %p77
      $region22: #{gconvlstm_forward.3} parent=11 // pred_check_branch
        %241 = sbr.rel (%p239) target = $region24
      $region23: #{gconvlstm_forward.3} parent=11 // pred_region
        _
      $region24: #{gconvlstm_forward.3} parent=11 // pred_fallthru
        _
      // Predicated region
      $region25: #{gconvlstm_forward.3} parent=11 // pred_check
        %p242 = pneg %p98
      $region26: #{gconvlstm_forward.3} parent=11 // pred_check_branch
        %244 = sbr.rel (%p242) target = $region28
      $region27: #{gconvlstm_forward.3} parent=11 // pred_region
        _
      $region28: #{gconvlstm_forward.3} parent=11 // pred_fallthru
        _
      // Predicated region
      $region29: #{gconvlstm_forward.3} parent=11 // pred_check
        %p245 = pneg %p119
      $region30: #{gconvlstm_forward.3} parent=11 // pred_check_branch
        %247 = sbr.rel (%p245) target = $region32
      $region31: #{gconvlstm_forward.3} parent=11 // pred_region
        _
      $region32: #{gconvlstm_forward.3} parent=11 // pred_fallthru
        _
    $region12: #{gconvlstm_forward.3} parent=5 // pred_fallthru
      _
    %p248 = scmp.lt.s32.totalorder %s14, 3
    // Predicated region
    $region33: #{gconvlstm_forward.3} parent=5 // pred_check
      %p249 = pneg %p248
    $region34: #{gconvlstm_forward.3} parent=5 // pred_check_branch
      %251 = sbr.rel (%p249) target = $region36
    $region35: #{gconvlstm_forward.3} parent=5 // pred_region
      // Predicated region
      $region37: #{gconvlstm_forward.3} parent=35 // pred_check
        %p252 = pneg %p139
      $region38: #{gconvlstm_forward.3} parent=35 // pred_check_branch
        %254 = sbr.rel (%p252) target = $region40
      $region39: #{gconvlstm_forward.3} parent=35 // pred_region
        %p255 = scmp.lt.s32.totalorder %s14, 2
        %s256 = scalar_select %p255, %s14, 2
        %s257 = smul.addr %s256, 4
        %s258 = smul.addr %s257, 8
        %s259 = scalar_lea.vmem %s5, %s258
      $region40: #{gconvlstm_forward.3} parent=35 // pred_fallthru
        _
      // Predicated region
      $region41: #{gconvlstm_forward.3} parent=35 // pred_check
        %p260 = pneg %p165
      $region42: #{gconvlstm_forward.3} parent=35 // pred_check_branch
        %262 = sbr.rel (%p260) target = $region44
      $region43: #{gconvlstm_forward.3} parent=35 // pred_region
        %p263 = scmp.lt.s32.totalorder %s14, 2
        %s264 = scalar_select %p263, %s14, 2
        %s265 = smul.addr %s264, 4
        %s266 = scalar_lea.vmem %s6, %s265
      $region44: #{gconvlstm_forward.3} parent=35 // pred_fallthru
        _
      // Predicated region
      $region45: #{gconvlstm_forward.3} parent=35 // pred_check
        %p267 = pneg %p191
      $region46: #{gconvlstm_forward.3} parent=35 // pred_check_branch
        %269 = sbr.rel (%p267) target = $region48
      $region47: #{gconvlstm_forward.3} parent=35 // pred_region
        %p270 = scmp.lt.s32.totalorder %s14, 2
        %s271 = scalar_select %p270, %s14, 2
        %s272 = scalar_lea.vmem %s7, %s271
      $region48: #{gconvlstm_forward.3} parent=35 // pred_fallthru
        _
    $region36: #{gconvlstm_forward.3} parent=5 // pred_fallthru
      _
    %p273 = scmp.le.s32.totalorder 1, %s14
    %p274 = scmp.lt.s32.totalorder %s14, 4
    %p275 = pnand %p273, %p274
    %p276 = pneg %p275
    // Predicated region
    $region49: #{gconvlstm_forward.3} parent=5 // pred_check
      _
    $region50: #{gconvlstm_forward.3} parent=5 // pred_check_branch
      %278 = sbr.rel (%p275) target = $region52
    $region51: #{gconvlstm_forward.3} parent=5 // pred_region
      %s279 = ssub.s32 %s14, 1
      %p280 = pneg %p35
      %p281 = pneg %p32
      %p282 = pneg %p56
      %p283 = pneg %p53
      %p284 = pneg %p77
      %p285 = pneg %p74
      %p286 = pneg %p98
      %p287 = pneg %p95
      %p288 = pneg %p119
      %p289 = pneg %p116
      %p290 = scmp.lt.s32.totalorder %s19, 2
      %s291 = scalar_select %p290, %s19, 2
      %s292 = smul.addr %s291, 4
      %s293 = smul.addr %s292, 8
      %s294 = scalar_lea.vmem %s5, %s293
      %p295 = pneg %p145
      %p296 = pneg %p142
      %p297 = scmp.lt.s32.totalorder %s19, 2
      %s298 = scalar_select %p297, %s19, 2
      %s299 = smul.addr %s298, 4
      %s300 = scalar_lea.vmem %s6, %s299
      %p301 = pneg %p171
      %p302 = pneg %p168
      %p303 = scmp.lt.s32.totalorder %s19, 2
      %s304 = scalar_select %p303, %s19, 2
      %s305 = scalar_lea.vmem %s7, %s304
      %p306 = pneg %p197
      %p307 = pneg %p194
      %p308 = pneg %p218
      %p309 = pneg %p215
      %p310 = scmp.lt.s32.totalorder %s19, 2
      %s311 = scalar_select %p310, %s19, 2
      %s312 = smul.addr %s311, 4
      %s313 = smul.addr %s312, 8
      %s314 = scalar_lea.vmem %s5, %s313
      %p315 = scmp.lt.s32.totalorder %s19, 2
      %s316 = scalar_select %p315, %s19, 2
      %s317 = smul.addr %s316, 4
      %s318 = scalar_lea.vmem %s6, %s317
      %p319 = scmp.lt.s32.totalorder %s19, 2
      %s320 = scalar_select %p319, %s19, 2
      %s321 = scalar_lea.vmem %s7, %s320
      %p322 = scmp.eq.s32.totalorder %s19, 0
      // Predicated region
      $region53: #{gconvlstm_forward.3} parent=51 // pred_check
        %p323 = pneg %p322
      $region54: #{gconvlstm_forward.3} parent=51 // pred_check_branch
        %325 = sbr.rel (%p323) target = $region56
      $region55: #{gconvlstm_forward.3} parent=51 // pred_region
        %v326 = vld [vmem:[%s2] sm:$0xff]
        %v327 = vld [vmem:[%s2 + $0x8] sm:$0xff]
        %v328 = vld [vmem:[%s1] sm:$0xff]
        %v329 = vld [vmem:[%s1 + $0x8] sm:$0xff]
        %v330 = vld [vmem:[%s3] sm:$0xff]
        %v331 = vld [vmem:[%s3 + $0x8] sm:$0xff]
        %v332 = vld [vmem:[%s3 + $0x10] sm:$0xff]
        %v333 = vld [vmem:[%s3 + $0x18] sm:$0xff]
        %v334 = vld [vmem:[%s3 + $0x20] sm:$0xff]
        %v335 = vld [vmem:[%s3 + $0x28] sm:$0xff]
        %v336 = vld [vmem:[%s3 + $0x30] sm:$0xff]
        %v337 = vld [vmem:[%s3 + $0x38] sm:$0xff]
        %vm338 = vcmask 523264
        %v340 = vsel %vm338, %v328, 0
        %v343 = vsel %vm338, %v329, 0
        %345 = vmatprep.subr.mxu0 0.0
        %346 = vmatpush1.msra.mxu0 %v330
        %347 = vmatprep.subr.mxu0 0.0
        %348 = vmatpush1.msra.mxu0 %v331
        %349 = vmatprep.subr.mxu0 0.0
        %350 = vmatpush1.msra.mxu0 %v332
        %351 = vmatprep.subr.mxu0 0.0
        %352 = vmatpush1.msra.mxu0 %v333
        %353 = vmatprep.subr.mxu0 0.0
        %354 = vmatpush1.msra.mxu0 %v334
        %355 = vmatprep.subr.mxu0 0.0
        %356 = vmatpush1.msra.mxu0 %v335
        %357 = vmatprep.subr.mxu0 0.0
        %358 = vmatpush1.msra.mxu0 %v336
        %359 = vmatprep.subr.mxu0 0.0
        %360 = vmatpush1.msra.mxu0 %v337
        %361 = vmatprep.subr.mxu0 0.0
        %362 = vmatpush1.msra.mxu0 0.0
        %363 = vmatprep.subr.mxu0 0.0
        %364 = vmatpush1.msra.mxu0 0.0
        %365 = vmatprep.subr.mxu0 0.0
        %366 = vmatpush1.msra.mxu0 0.0
        %367 = vmatprep.subr.mxu0 0.0
        %368 = vmatpush1.msra.mxu0 0.0
        %369 = vmatprep.subr.mxu0 0.0
        %370 = vmatpush1.msra.mxu0 0.0
        %371 = vmatprep.subr.mxu0 0.0
        %372 = vmatpush1.msra.mxu0 0.0
        %373 = vmatprep.subr.mxu0 0.0
        %374 = vmatpush1.msra.mxu0 0.0
        %375 = vmatprep.subr.mxu0 0.0
        %376 = vmatpush1.msra.mxu0 0.0
        %377 = vmatprep.subr.mxu0 0.0
        %378 = vmatpush1.msra.mxu0 0.0
        %379 = vmatprep.subr.mxu0 0.0
        %380 = vmatpush1.msra.mxu0 0.0
        %381 = vmatprep.subr.mxu0 0.0
        %382 = vmatpush1.msra.mxu0 0.0
        %383 = vmatprep.subr.mxu0 0.0
        %384 = vmatpush1.msra.mxu0 0.0
        %385 = vmatprep.subr.mxu0 0.0
        %386 = vmatpush1.msra.mxu0 0.0
        %387 = vmatprep.subr.mxu0 0.0
        %388 = vmatpush1.msra.mxu0 0.0
        %389 = vmatprep.subr.mxu0 0.0
        %390 = vmatpush1.msra.mxu0 0.0
        %391 = vmatprep.subr.mxu0 0.0
        %392 = vmatpush1.msra.mxu0 0.0
        %393 = vmatprep.subr.mxu0 0.0
        %394 = vmatpush1.msra.mxu0 0.0
        %395 = vmatprep.subr.mxu0 0.0
        %396 = vmatpush1.msra.mxu0 0.0
        %397 = vmatprep.subr.mxu0 0.0
        %398 = vmatpush1.msra.mxu0 0.0
        %399 = vmatprep.subr.mxu0 0.0
        %400 = vmatpush1.msra.mxu0 0.0
        %401 = vmatprep.subr.mxu0 0.0
        %402 = vmatpush1.msra.mxu0 0.0
        %403 = vmatprep.subr.mxu0 0.0
        %404 = vmatpush1.msra.mxu0 0.0
        %405 = vmatprep.subr.mxu0 0.0
        %406 = vmatpush1.msra.mxu0 0.0
        %407 = vmatprep.subr.mxu0 0.0
        %408 = vmatpush1.msra.mxu0 0.0
        %409 = vmatprep.mubr.f32.mxu0 0.0
        %410 = vmatmul.mubr.f32.gmra.mrb[0].mxu0 %v340
        %v411 = vpop.f32.mrb[0].mxu0
        %v412 = vadd.f32 0.0, %v411
        %v413 = vpop.f32.mrb[0].mxu0
        %414 = vmatprep.mubr.f32.mxu0 0.0
        %415 = vmatmul.mubr.f32.gmra.mrb[0].mxu0 %v343
        %v416 = vpop.f32.mrb[0].mxu0
        %v417 = vadd.f32 0.0, %v416
        %v418 = vpop.f32.mrb[0].mxu0
        %419 = vdwg.mxu0
        %v420 = vld [vmem:[%s4] sm:$0x1]
        %v422 = vlaneseq
        %v423 = vshrl.u32 %v422, 7
        %v424 = vsub.s32 0, %v423
        %v425 = vrot.slane %v420, %v424
        %vm427 = vcmask 130048
        %v429 = vsel %vm427, %v326, 0
        %v432 = vsel %vm427, %v327, 0
        %434 = vmatprep.subr.mxu0 0.0
        %435 = vmatpush1.msra.mxu0 %v412
        %436 = vmatprep.subr.mxu0 0.0
        %437 = vmatpush1.msra.mxu0 %v417
        %438 = vmatprep.subr.mxu0 0.0
        %439 = vmatpush1.msra.mxu0 0.0
        %440 = vmatprep.subr.mxu0 0.0
        %441 = vmatpush1.msra.mxu0 0.0
        %442 = vmatprep.subr.mxu0 0.0
        %443 = vmatpush1.msra.mxu0 0.0
        %444 = vmatprep.subr.mxu0 0.0
        %445 = vmatpush1.msra.mxu0 0.0
        %446 = vmatprep.subr.mxu0 0.0
        %447 = vmatpush1.msra.mxu0 0.0
        %448 = vmatprep.subr.mxu0 0.0
        %449 = vmatpush1.msra.mxu0 0.0
        %450 = vmatprep.subr.mxu0 0.0
        %451 = vmatpush1.msra.mxu0 0.0
        %452 = vmatprep.subr.mxu0 0.0
        %453 = vmatpush1.msra.mxu0 0.0
        %454 = vmatprep.subr.mxu0 0.0
        %455 = vmatpush1.msra.mxu0 0.0
        %456 = vmatprep.subr.mxu0 0.0
        %457 = vmatpush1.msra.mxu0 0.0
        %458 = vmatprep.subr.mxu0 0.0
        %459 = vmatpush1.msra.mxu0 0.0
        %460 = vmatprep.subr.mxu0 0.0
        %461 = vmatpush1.msra.mxu0 0.0
        %462 = vmatprep.subr.mxu0 0.0
        %463 = vmatpush1.msra.mxu0 0.0
        %464 = vmatprep.subr.mxu0 0.0
        %465 = vmatpush1.msra.mxu0 0.0
        %466 = vmatprep.subr.mxu0 0.0
        %467 = vmatpush1.msra.mxu0 0.0
        %468 = vmatprep.subr.mxu0 0.0
        %469 = vmatpush1.msra.mxu0 0.0
        %470 = vmatprep.subr.mxu0 0.0
        %471 = vmatpush1.msra.mxu0 0.0
        %472 = vmatprep.subr.mxu0 0.0
        %473 = vmatpush1.msra.mxu0 0.0
        %474 = vmatprep.subr.mxu0 0.0
        %475 = vmatpush1.msra.mxu0 0.0
        %476 = vmatprep.subr.mxu0 0.0
        %477 = vmatpush1.msra.mxu0 0.0
        %478 = vmatprep.subr.mxu0 0.0
        %479 = vmatpush1.msra.mxu0 0.0
        %480 = vmatprep.subr.mxu0 0.0
        %481 = vmatpush1.msra.mxu0 0.0
        %482 = vmatprep.subr.mxu0 0.0
        %483 = vmatpush1.msra.mxu0 0.0
        %484 = vmatprep.subr.mxu0 0.0
        %485 = vmatpush1.msra.mxu0 0.0
        %486 = vmatprep.subr.mxu0 0.0
        %487 = vmatpush1.msra.mxu0 0.0
        %488 = vmatprep.subr.mxu0 0.0
        %489 = vmatpush1.msra.mxu0 0.0
        %490 = vmatprep.subr.mxu0 0.0
        %491 = vmatpush1.msra.mxu0 0.0
        %492 = vmatprep.subr.mxu0 0.0
        %493 = vmatpush1.msra.mxu0 0.0
        %494 = vmatprep.subr.mxu0 0.0
        %495 = vmatpush1.msra.mxu0 0.0
        %496 = vmatprep.subr.mxu0 0.0
        %497 = vmatpush1.msra.mxu0 0.0
        %498 = vmatprep.mubr.f32.mxu0 0.0
        %499 = vmatmul.mubr.f32.gmra.mrb[0].mxu0 %v429
        %v500 = vpop.f32.mrb[0].mxu0
        %v501 = vadd.f32 %v425, %v500
        %v502 = vpop.f32.mrb[0].mxu0
        %503 = vmatprep.mubr.f32.mxu0 0.0
        %504 = vmatmul.mubr.f32.gmra.mrb[0].mxu0 %v432
        %v505 = vpop.f32.mrb[0].mxu0
        %v506 = vadd.f32 %v425, %v505
        %v507 = vpop.f32.mrb[0].mxu0
        %508 = vdwg.mxu0
        %vm509 = vcmask 31744
        %510 = vst.msk [vmem:[#allocation2] sm:$0xff] %vm509, %v501
        %511 = vst.msk [vmem:[#allocation2 + $0x8] sm:$0xff] %vm509, %v506
        %514 = vrot.lane.b32.xlu0 %v501, 124
        %v515 = vpop.permute.xlu0 %514
        %516 = vrot.lane.b32.xlu0 %v506, 124
        %v517 = vpop.permute.xlu0 %516
        %520 = vst.msk [vmem:[#allocation3] sm:$0xff] %vm509, %v515
        %521 = vst.msk [vmem:[#allocation3 + $0x8] sm:$0xff] %vm509, %v517
      $region56: #{gconvlstm_forward.3} parent=51 // pred_fallthru
        _
      %v522 = vld [vmem:[%s0] sm:$0xff]
      %v523 = vld [vmem:[%s0 + $0x8] sm:$0xff]
      %v524 = vld [vmem:[%s314] sm:$0xff]
      %v525 = vld [vmem:[%s314 + $0x8] sm:$0xff]
      %v526 = vld [vmem:[%s314 + $0x10] sm:$0xff]
      %v527 = vld [vmem:[%s314 + $0x18] sm:$0xff]
      %v528 = vld [vmem:[#allocation2] sm:$0xff]
      %v529 = vld [vmem:[#allocation2 + $0x8] sm:$0xff]
      %v530 = vld [vmem:[%s318] sm:$0xf]
      %vm531 = vcmask 31744
      %v533 = vsel %vm531, %v528, 0
      %v536 = vsel %vm531, %v529, 0
      %vm538 = vcmask 1043456
      %v540 = vsel %vm538, %v530, 0
      %542 = vmatprep.subr.mxu0 0.0
      %543 = vmatpush1.msra.mxu0 %v540
      %544 = vmatprep.subr.mxu0 0.0
      %545 = vmatpush1.msra.mxu0 0.0
      %546 = vmatprep.subr.mxu0 0.0
      %547 = vmatpush1.msra.mxu0 0.0
      %548 = vmatprep.subr.mxu0 0.0
      %549 = vmatpush1.msra.mxu0 0.0
      %550 = vmatprep.subr.mxu0 0.0
      %551 = vmatpush1.msra.mxu0 0.0
      %552 = vmatprep.subr.mxu0 0.0
      %553 = vmatpush1.msra.mxu0 0.0
      %554 = vmatprep.subr.mxu0 0.0
      %555 = vmatpush1.msra.mxu0 0.0
      %556 = vmatprep.subr.mxu0 0.0
      %557 = vmatpush1.msra.mxu0 0.0
      %558 = vmatprep.subr.mxu0 0.0
      %559 = vmatpush1.msra.mxu0 0.0
      %560 = vmatprep.subr.mxu0 0.0
      %561 = vmatpush1.msra.mxu0 0.0
      %562 = vmatprep.subr.mxu0 0.0
      %563 = vmatpush1.msra.mxu0 0.0
      %564 = vmatprep.subr.mxu0 0.0
      %565 = vmatpush1.msra.mxu0 0.0
      %566 = vmatprep.subr.mxu0 0.0
      %567 = vmatpush1.msra.mxu0 0.0
      %568 = vmatprep.subr.mxu0 0.0
      %569 = vmatpush1.msra.mxu0 0.0
      %570 = vmatprep.subr.mxu0 0.0
      %571 = vmatpush1.msra.mxu0 0.0
      %572 = vmatprep.subr.mxu0 0.0
      %573 = vmatpush1.msra.mxu0 0.0
      %574 = vmatprep.subr.mxu0 0.0
      %575 = vmatpush1.msra.mxu0 0.0
      %576 = vmatprep.subr.mxu0 0.0
      %577 = vmatpush1.msra.mxu0 0.0
      %578 = vmatprep.subr.mxu0 0.0
      %579 = vmatpush1.msra.mxu0 0.0
      %580 = vmatprep.subr.mxu0 0.0
      %581 = vmatpush1.msra.mxu0 0.0
      %582 = vmatprep.subr.mxu0 0.0
      %583 = vmatpush1.msra.mxu0 0.0
      %584 = vmatprep.subr.mxu0 0.0
      %585 = vmatpush1.msra.mxu0 0.0
      %586 = vmatprep.subr.mxu0 0.0
      %587 = vmatpush1.msra.mxu0 0.0
      %588 = vmatprep.subr.mxu0 0.0
      %589 = vmatpush1.msra.mxu0 0.0
      %590 = vmatprep.subr.mxu0 0.0
      %591 = vmatpush1.msra.mxu0 0.0
      %592 = vmatprep.subr.mxu0 0.0
      %593 = vmatpush1.msra.mxu0 0.0
      %594 = vmatprep.subr.mxu0 0.0
      %595 = vmatpush1.msra.mxu0 0.0
      %596 = vmatprep.subr.mxu0 0.0
      %597 = vmatpush1.msra.mxu0 0.0
      %598 = vmatprep.subr.mxu0 0.0
      %599 = vmatpush1.msra.mxu0 0.0
      %600 = vmatprep.subr.mxu0 0.0
      %601 = vmatpush1.msra.mxu0 0.0
      %602 = vmatprep.subr.mxu0 0.0
      %603 = vmatpush1.msra.mxu0 0.0
      %604 = vmatprep.subr.mxu0 0.0
      %605 = vmatpush1.msra.mxu0 0.0
      %606 = vmatprep.mubr.f32.mxu0 0.0
      %607 = vmatmul.mubr.f32.gmra.mrb[0].mxu0 %v533
      %v608 = vpop.f32.mrb[0].mxu0
      %v609 = vadd.f32 0.0, %v608
      %v610 = vpop.f32.mrb[0].mxu0
      %611 = vmatprep.mubr.f32.mxu0 0.0
      %612 = vmatmul.mubr.f32.gmra.mrb[0].mxu0 %v536
      %v613 = vpop.f32.mrb[0].mxu0
      %v614 = vadd.f32 0.0, %v613
      %v615 = vpop.f32.mrb[0].mxu0
      %616 = vdwg.mxu0
      %v617 = vld [vmem:[%s2] sm:$0xff]
      %v618 = vld [vmem:[%s2 + $0x8] sm:$0xff]
      %vm619 = vcmask 261120
      %v621 = vsel %vm619, %v522, 0
      %v624 = vsel %vm619, %v523, 0
      %626 = vmatprep.subr.mxu0 0.0
      %627 = vmatpush1.msra.mxu0 %v524
      %628 = vmatprep.subr.mxu0 0.0
      %629 = vmatpush1.msra.mxu0 %v525
      %630 = vmatprep.subr.mxu0 0.0
      %631 = vmatpush1.msra.mxu0 %v526
      %632 = vmatprep.subr.mxu0 0.0
      %633 = vmatpush1.msra.mxu0 %v527
      %634 = vmatprep.subr.mxu0 0.0
      %635 = vmatpush1.msra.mxu0 0.0
      %636 = vmatprep.subr.mxu0 0.0
      %637 = vmatpush1.msra.mxu0 0.0
      %638 = vmatprep.subr.mxu0 0.0
      %639 = vmatpush1.msra.mxu0 0.0
      %640 = vmatprep.subr.mxu0 0.0
      %641 = vmatpush1.msra.mxu0 0.0
      %642 = vmatprep.subr.mxu0 0.0
      %643 = vmatpush1.msra.mxu0 0.0
      %644 = vmatprep.subr.mxu0 0.0
      %645 = vmatpush1.msra.mxu0 0.0
      %646 = vmatprep.subr.mxu0 0.0
      %647 = vmatpush1.msra.mxu0 0.0
      %648 = vmatprep.subr.mxu0 0.0
      %649 = vmatpush1.msra.mxu0 0.0
      %650 = vmatprep.subr.mxu0 0.0
      %651 = vmatpush1.msra.mxu0 0.0
      %652 = vmatprep.subr.mxu0 0.0
      %653 = vmatpush1.msra.mxu0 0.0
      %654 = vmatprep.subr.mxu0 0.0
      %655 = vmatpush1.msra.mxu0 0.0
      %656 = vmatprep.subr.mxu0 0.0
      %657 = vmatpush1.msra.mxu0 0.0
      %658 = vmatprep.subr.mxu0 0.0
      %659 = vmatpush1.msra.mxu0 0.0
      %660 = vmatprep.subr.mxu0 0.0
      %661 = vmatpush1.msra.mxu0 0.0
      %662 = vmatprep.subr.mxu0 0.0
      %663 = vmatpush1.msra.mxu0 0.0
      %664 = vmatprep.subr.mxu0 0.0
      %665 = vmatpush1.msra.mxu0 0.0
      %666 = vmatprep.subr.mxu0 0.0
      %667 = vmatpush1.msra.mxu0 0.0
      %668 = vmatprep.subr.mxu0 0.0
      %669 = vmatpush1.msra.mxu0 0.0
      %670 = vmatprep.subr.mxu0 0.0
      %671 = vmatpush1.msra.mxu0 0.0
      %672 = vmatprep.subr.mxu0 0.0
      %673 = vmatpush1.msra.mxu0 0.0
      %674 = vmatprep.subr.mxu0 0.0
      %675 = vmatpush1.msra.mxu0 0.0
      %676 = vmatprep.subr.mxu0 0.0
      %677 = vmatpush1.msra.mxu0 0.0
      %678 = vmatprep.subr.mxu0 0.0
      %679 = vmatpush1.msra.mxu0 0.0
      %680 = vmatprep.subr.mxu0 0.0
      %681 = vmatpush1.msra.mxu0 0.0
      %682 = vmatprep.subr.mxu0 0.0
      %683 = vmatpush1.msra.mxu0 0.0
      %684 = vmatprep.subr.mxu0 0.0
      %685 = vmatpush1.msra.mxu0 0.0
      %686 = vmatprep.subr.mxu0 0.0
      %687 = vmatpush1.msra.mxu0 0.0
      %688 = vmatprep.subr.mxu0 0.0
      %689 = vmatpush1.msra.mxu0 0.0
      %690 = vmatprep.mubr.f32.mxu0 0.0
      %691 = vmatmul.mubr.f32.gmra.mrb[0].mxu0 %v621
      %v692 = vpop.f32.mrb[0].mxu0
      %v693 = vadd.f32 %v609, %v692
      %v694 = vpop.f32.mrb[0].mxu0
      %695 = vmatprep.mubr.f32.mxu0 0.0
      %696 = vmatmul.mubr.f32.gmra.mrb[0].mxu0 %v624
      %v697 = vpop.f32.mrb[0].mxu0
      %v698 = vadd.f32 %v614, %v697
      %v699 = vpop.f32.mrb[0].mxu0
      %700 = vdwg.mxu0
      %v701 = vld [vmem:[%s321] sm:$0x1]
      %v703 = vlaneseq
      %v704 = vshrl.u32 %v703, 7
      %v705 = vsub.s32 0, %v704
      %v706 = vrot.slane %v701, %v705
      %vm708 = vcmask 130048
      %v710 = vsel %vm708, %v617, 0
      %v713 = vsel %vm708, %v618, 0
      %715 = vmatprep.subr.mxu0 0.0
      %716 = vmatpush1.msra.mxu0 %v693
      %717 = vmatprep.subr.mxu0 0.0
      %718 = vmatpush1.msra.mxu0 %v698
      %719 = vmatprep.subr.mxu0 0.0
      %720 = vmatpush1.msra.mxu0 0.0
      %721 = vmatprep.subr.mxu0 0.0
      %722 = vmatpush1.msra.mxu0 0.0
      %723 = vmatprep.subr.mxu0 0.0
      %724 = vmatpush1.msra.mxu0 0.0
      %725 = vmatprep.subr.mxu0 0.0
      %726 = vmatpush1.msra.mxu0 0.0
      %727 = vmatprep.subr.mxu0 0.0
      %728 = vmatpush1.msra.mxu0 0.0
      %729 = vmatprep.subr.mxu0 0.0
      %730 = vmatpush1.msra.mxu0 0.0
      %731 = vmatprep.subr.mxu0 0.0
      %732 = vmatpush1.msra.mxu0 0.0
      %733 = vmatprep.subr.mxu0 0.0
      %734 = vmatpush1.msra.mxu0 0.0
      %735 = vmatprep.subr.mxu0 0.0
      %736 = vmatpush1.msra.mxu0 0.0
      %737 = vmatprep.subr.mxu0 0.0
      %738 = vmatpush1.msra.mxu0 0.0
      %739 = vmatprep.subr.mxu0 0.0
      %740 = vmatpush1.msra.mxu0 0.0
      %741 = vmatprep.subr.mxu0 0.0
      %742 = vmatpush1.msra.mxu0 0.0
      %743 = vmatprep.subr.mxu0 0.0
      %744 = vmatpush1.msra.mxu0 0.0
      %745 = vmatprep.subr.mxu0 0.0
      %746 = vmatpush1.msra.mxu0 0.0
      %747 = vmatprep.subr.mxu0 0.0
      %748 = vmatpush1.msra.mxu0 0.0
      %749 = vmatprep.subr.mxu0 0.0
      %750 = vmatpush1.msra.mxu0 0.0
      %751 = vmatprep.subr.mxu0 0.0
      %752 = vmatpush1.msra.mxu0 0.0
      %753 = vmatprep.subr.mxu0 0.0
      %754 = vmatpush1.msra.mxu0 0.0
      %755 = vmatprep.subr.mxu0 0.0
      %756 = vmatpush1.msra.mxu0 0.0
      %757 = vmatprep.subr.mxu0 0.0
      %758 = vmatpush1.msra.mxu0 0.0
      %759 = vmatprep.subr.mxu0 0.0
      %760 = vmatpush1.msra.mxu0 0.0
      %761 = vmatprep.subr.mxu0 0.0
      %762 = vmatpush1.msra.mxu0 0.0
      %763 = vmatprep.subr.mxu0 0.0
      %764 = vmatpush1.msra.mxu0 0.0
      %765 = vmatprep.subr.mxu0 0.0
      %766 = vmatpush1.msra.mxu0 0.0
      %767 = vmatprep.subr.mxu0 0.0
      %768 = vmatpush1.msra.mxu0 0.0
      %769 = vmatprep.subr.mxu0 0.0
      %770 = vmatpush1.msra.mxu0 0.0
      %771 = vmatprep.subr.mxu0 0.0
      %772 = vmatpush1.msra.mxu0 0.0
      %773 = vmatprep.subr.mxu0 0.0
      %774 = vmatpush1.msra.mxu0 0.0
      %775 = vmatprep.subr.mxu0 0.0
      %776 = vmatpush1.msra.mxu0 0.0
      %777 = vmatprep.subr.mxu0 0.0
      %778 = vmatpush1.msra.mxu0 0.0
      %779 = vmatprep.mubr.f32.mxu0 0.0
      %780 = vmatmul.mubr.f32.gmra.mrb[0].mxu0 %v710
      %v781 = vpop.f32.mrb[0].mxu0
      %v782 = vadd.f32 %v706, %v781
      %v783 = vpop.f32.mrb[0].mxu0
      %784 = vmatprep.mubr.f32.mxu0 0.0
      %785 = vmatmul.mubr.f32.gmra.mrb[0].mxu0 %v713
      %v786 = vpop.f32.mrb[0].mxu0
      %v787 = vadd.f32 %v706, %v786
      %v788 = vpop.f32.mrb[0].mxu0
      %789 = vdwg.mxu0
      %v790 = vxor.u32 %v782, 2147483648
      %v791 = vxor.u32 %v787, 2147483648
      %v792 = vmul.f32 %v790, 1.442695
      %v793 = vpow.pop %v792
      %v794 = vmul.f32 %v791, 1.442695
      %v795 = vpow.pop %v794
      %v796 = vadd.f32 %v793, 1.0
      %v797 = vadd.f32 %v795, 1.0
      %v798 = vrcp.pop %v796
      %v799 = vmul.f32 1.0, %v798
      %v800 = vrcp.pop %v797
      %v801 = vmul.f32 1.0, %v800
      %v802 = vtanh.pop %v782
      %v803 = vtanh.pop %v787
      %v804 = vld [vmem:[#allocation3] sm:$0xff]
      %v805 = vld [vmem:[#allocation3 + $0x8] sm:$0xff]
      %v806 = vmul.f32 %v799, %v804
      %v807 = vmul.f32 %v801, %v805
      %810 = vrot.lane.b32.xlu0 %v802, 120
      %v811 = vpop.permute.xlu0 %810
      %812 = vrot.lane.b32.xlu0 %v803, 120
      %v813 = vpop.permute.xlu0 %812
      %v816 = vmul.f32 %v799, %v811
      %v817 = vmul.f32 %v801, %v813
      %820 = vrot.lane.b32.xlu0 %v816, 124
      %v821 = vpop.permute.xlu0 %820
      %822 = vrot.lane.b32.xlu0 %v817, 124
      %v823 = vpop.permute.xlu0 %822
      %v826 = vadd.f32 %v806, %v821
      %v827 = vadd.f32 %v807, %v823
      %v828 = vtanh.pop %v826
      %v829 = vtanh.pop %v827
      %832 = vrot.lane.b32.xlu0 %v828, 8
      %v833 = vpop.permute.xlu0 %832
      %834 = vrot.lane.b32.xlu0 %v829, 8
      %v835 = vpop.permute.xlu0 %834
      %v838 = vmul.f32 %v799, %v833
      %v839 = vmul.f32 %v801, %v835
      %842 = vrot.lane.b32.xlu0 %v838, 120
      %v843 = vpop.permute.xlu0 %842
      %844 = vrot.lane.b32.xlu0 %v839, 120
      %v845 = vpop.permute.xlu0 %844
      %848 = vst.msk [vmem:[#allocation2] sm:$0xff] %vm531, %v843
      %849 = vst.msk [vmem:[#allocation2 + $0x8] sm:$0xff] %vm531, %v845
      %850 = vst.msk [vmem:[#allocation3] sm:$0xff] %vm531, %v826
      %851 = vst.msk [vmem:[#allocation3 + $0x8] sm:$0xff] %vm531, %v827
      %vm852 = vcmp.ge.f32.partialorder %v838, 0.0
      %vm853 = vcmp.ge.f32.partialorder %v839, 0.0
      %v854 = vmul.f32 %v838, 0.01
      %v855 = vmul.f32 %v839, 0.01
      %v856 = vsel %vm852, %v838, %v854
      %v857 = vsel %vm853, %v839, %v855
      %860 = vrot.lane.b32.xlu0 %v856, 120
      %v861 = vpop.permute.xlu0 %860
      %862 = vrot.lane.b32.xlu0 %v857, 120
      %v863 = vpop.permute.xlu0 %862
      %s866 = smul.u32 %s19, 16
      %s867 = scalar_lea.vmem %s8, %s866
      %868 = vst.msk [vmem:[%s867] sm:$0xff] %vm531, %v861
      %869 = vst.msk [vmem:[%s867 + $0x8] sm:$0xff] %vm531, %v863
      // Predicated region
      $region57: #{gconvlstm_forward.3} parent=51 // pred_check
        %p870 = pneg %p215
      $region58: #{gconvlstm_forward.3} parent=51 // pred_check_branch
        %872 = sbr.rel (%p870) target = $region60
      $region59: #{gconvlstm_forward.3} parent=51 // pred_region
        _
      $region60: #{gconvlstm_forward.3} parent=51 // pred_fallthru
        _
      // Predicated region
      $region61: #{gconvlstm_forward.3} parent=51 // pred_check
        %p873 = pneg %p215
      $region62: #{gconvlstm_forward.3} parent=51 // pred_check_branch
        %875 = sbr.rel (%p873) target = $region64
      $region63: #{gconvlstm_forward.3} parent=51 // pred_region
        _
      $region64: #{gconvlstm_forward.3} parent=51 // pred_fallthru
        _
    $region52: #{gconvlstm_forward.3} parent=5 // pred_fallthru
      _
    %p876 = scmp.le.s32.totalorder 2, %s14
    // Predicated region
    $region65: #{gconvlstm_forward.3} parent=5 // pred_check
      %p877 = pneg %p876
    $region66: #{gconvlstm_forward.3} parent=5 // pred_check_branch
      %879 = sbr.rel (%p877) target = $region68
    $region67: #{gconvlstm_forward.3} parent=5 // pred_region
      %s880 = ssub.s32 %s14, 2
    $region68: #{gconvlstm_forward.3} parent=5 // pred_fallthru
      _
  $region6: #{gconvlstm_forward.3} parent=0 // loop_footer
    %s18 = sadd.s32 1, %s14
  $region7: #{gconvlstm_forward.3} parent=0 // loop_footer_branch
    %13 = sbr.rel target = $region3
  $region8: #{gconvlstm_forward.3} parent=0 // loop_exit
    _

// kernel: gconvlstm_forward.2
$region0: #{gconvlstm_forward.2}
  #allocation0 [shape = 'u32[]', space=smem, size = 0x4, offset = 0x4, fixed_abs, tag = 'smem constant byte address 0x4 - core index']
  #allocation1 [shape = 'u32[144,128]{1,0:T(1,128)}', space=vmem, size = 0x12000, scoped, tag = 'internal scratch']
  #allocation2 [shape = 'f32[16,32]{1,0:T(8,128)}', space=vmem, size = 0x2000, scoped, tag = 'scratch operand']
  #allocation3 [shape = 'f32[16,32]{1,0:T(8,128)}', space=vmem, size = 0x2000, scoped, tag = 'scratch operand']
  %s0 = inlined_call_operand.vmem [shape: f32[4,16,4], index: 0, kind: input, shape index: {}]
  %s1 = inlined_call_operand.vmem [shape: f32[16,16], index: 1, kind: input, shape index: {}]
  %s2 = inlined_call_operand.vmem [shape: f32[4,4,128], index: 2, kind: input, shape index: {}]
  %s3 = inlined_call_operand.vmem [shape: f32[4,32,128], index: 3, kind: input, shape index: {}]
  %s4 = inlined_call_operand.vmem [shape: f32[4,1,128], index: 4, kind: input, shape index: {}]
  %s5 = inlined_call_operand.vmem [shape: f32[16,32], index: 5, kind: output, shape index: {0}]
  %s6 = inlined_call_operand.vmem [shape: f32[16,32], index: 6, kind: output, shape index: {1}]
  %7 = xla_tuple %s5, %s6
  %s8 = sld [smem:[#allocation0]]
  $region69: #{gconvlstm_forward.2} parent=0
    _
  %s10 = ssub.s32 1, %s8
  %s11 = scalar_select 0, %s10, %s8
  loop: start=0, step=1, limit=6
  $region2: #{gconvlstm_forward.2} parent=0 // loop_pre_header
    _
  $region3: #{gconvlstm_forward.2} parent=0 // loop_header
    %s13 = sphi 0, %s17
    %p14 = scmp.ge.s32.totalorder %s13, 6
    %s23 = sphi 0, %s25
    %s26 = sphi 0, %s23
    %s27 = sphi 0, %s26
    %s43 = sphi 0, %s27
    %s47 = sphi 0, %s47
    %s49 = sphi 0, %s47
    %s50 = sphi 0, %s49
    %s64 = sphi 0, %s50
    %s70 = sphi 0, %s72
    %s73 = sphi 0, %s70
    %s74 = sphi 0, %s73
    %s90 = sphi 0, %s74
    %s96 = sphi 0, %s98
    %s99 = sphi 0, %s96
    %s100 = sphi 0, %s99
    %s116 = sphi 0, %s100
    %s122 = sphi 0, %s124
    %s125 = sphi 0, %s122
    %s126 = sphi 0, %s125
    %s142 = sphi 0, %s126
    %s146 = sphi 0, %s146
    %s148 = sphi 0, %s146
    %s149 = sphi 0, %s148
    %s163 = sphi 0, %s149
    %s167 = sphi 0, %s167
    %s169 = sphi 0, %s167
    %s170 = sphi 0, %s169
    %s184 = sphi 0, %s170
  $region4: #{gconvlstm_forward.2} parent=0 // loop_header_branch
    %16 = sbr.rel (%p14) target = $region8
  $region5: #{gconvlstm_forward.2} parent=0 // loop_body
    %s18 = ssub.s32 %s13, 1
    %s19 = ssub.s32 %s13, 2
    %s20 = sadd.s32 %s13, 1
    %s21 = ssub.s32 %s13, %s20
    %p22 = scmp.eq.s32.totalorder %s21, 0
    %s24 = sadd.s32 %s23, 1
    %s25 = scalar_select %p22, %s23, %s24
    %p28 = pneg %p22
    %p29 = scmp.eq.s32.totalorder %s13, 3
    %p30 = por %p28, %p29
    %p31 = scmp.ne.s32.totalorder %s23, %s26
    %p32 = scmp.eq.s32.totalorder %s13, 0
    %p33 = por %p31, %p32
    %p34 = scmp.ne.s32.totalorder %s23, %s26
    %p35 = scmp.eq.s32.totalorder %s18, 3
    %p36 = por %p34, %p35
    %p37 = scmp.ne.s32.totalorder %s26, %s27
    %p38 = scmp.eq.s32.totalorder %s18, 0
    %p39 = por %p37, %p38
    %p40 = scmp.ne.s32.totalorder %s26, %s27
    %p41 = scmp.eq.s32.totalorder %s19, 3
    %p42 = por %p40, %p41
    %p44 = scmp.ne.s32.totalorder %s27, %s43
    %p45 = scmp.eq.s32.totalorder %s19, 0
    %p46 = por %p44, %p45
    %s48 = sadd.s32 %s47, 1
    %p51 = scmp.eq.s32.totalorder %s13, 3
    %p52 = scmp.ne.s32.totalorder %s47, %s49
    %p53 = scmp.eq.s32.totalorder %s13, 0
    %p54 = por %p52, %p53
    %p55 = scmp.ne.s32.totalorder %s47, %s49
    %p56 = scmp.eq.s32.totalorder %s18, 3
    %p57 = por %p55, %p56
    %p58 = scmp.ne.s32.totalorder %s49, %s50
    %p59 = scmp.eq.s32.totalorder %s18, 0
    %p60 = por %p58, %p59
    %p61 = scmp.ne.s32.totalorder %s49, %s50
    %p62 = scmp.eq.s32.totalorder %s19, 3
    %p63 = por %p61, %p62
    %p65 = scmp.ne.s32.totalorder %s50, %s64
    %p66 = scmp.eq.s32.totalorder %s19, 0
    %p67 = por %p65, %p66
    %s68 = ssub.s32 %s13, %s20
    %p69 = scmp.eq.s32.totalorder %s68, 0
    %s71 = sadd.s32 %s70, 1
    %s72 = scalar_select %p69, %s70, %s71
    %p75 = pneg %p69
    %p76 = scmp.eq.s32.totalorder %s13, 3
    %p77 = por %p75, %p76
    %p78 = scmp.ne.s32.totalorder %s70, %s73
    %p79 = scmp.eq.s32.totalorder %s13, 0
    %p80 = por %p78, %p79
    %p81 = scmp.ne.s32.totalorder %s70, %s73
    %p82 = scmp.eq.s32.totalorder %s18, 3
    %p83 = por %p81, %p82
    %p84 = scmp.ne.s32.totalorder %s73, %s74
    %p85 = scmp.eq.s32.totalorder %s18, 0
    %p86 = por %p84, %p85
    %p87 = scmp.ne.s32.totalorder %s73, %s74
    %p88 = scmp.eq.s32.totalorder %s19, 3
    %p89 = por %p87, %p88
    %p91 = scmp.ne.s32.totalorder %s74, %s90
    %p92 = scmp.eq.s32.totalorder %s19, 0
    %p93 = por %p91, %p92
    %s94 = ssub.s32 %s13, %s20
    %p95 = scmp.eq.s32.totalorder %s94, 0
    %s97 = sadd.s32 %s96, 1
    %s98 = scalar_select %p95, %s96, %s97
    %p101 = pneg %p95
    %p102 = scmp.eq.s32.totalorder %s13, 3
    %p103 = por %p101, %p102
    %p104 = scmp.ne.s32.totalorder %s96, %s99
    %p105 = scmp.eq.s32.totalorder %s13, 0
    %p106 = por %p104, %p105
    %p107 = scmp.ne.s32.totalorder %s96, %s99
    %p108 = scmp.eq.s32.totalorder %s18, 3
    %p109 = por %p107, %p108
    %p110 = scmp.ne.s32.totalorder %s99, %s100
    %p111 = scmp.eq.s32.totalorder %s18, 0
    %p112 = por %p110, %p111
    %p113 = scmp.ne.s32.totalorder %s99, %s100
    %p114 = scmp.eq.s32.totalorder %s19, 3
    %p115 = por %p113, %p114
    %p117 = scmp.ne.s32.totalorder %s100, %s116
    %p118 = scmp.eq.s32.totalorder %s19, 0
    %p119 = por %p117, %p118
    %s120 = ssub.s32 %s13, %s20
    %p121 = scmp.eq.s32.totalorder %s120, 0
    %s123 = sadd.s32 %s122, 1
    %s124 = scalar_select %p121, %s122, %s123
    %p127 = pneg %p121
    %p128 = scmp.eq.s32.totalorder %s13, 3
    %p129 = por %p127, %p128
    %p130 = scmp.ne.s32.totalorder %s122, %s125
    %p131 = scmp.eq.s32.totalorder %s13, 0
    %p132 = por %p130, %p131
    %p133 = scmp.ne.s32.totalorder %s122, %s125
    %p134 = scmp.eq.s32.totalorder %s18, 3
    %p135 = por %p133, %p134
    %p136 = scmp.ne.s32.totalorder %s125, %s126
    %p137 = scmp.eq.s32.totalorder %s18, 0
    %p138 = por %p136, %p137
    %p139 = scmp.ne.s32.totalorder %s125, %s126
    %p140 = scmp.eq.s32.totalorder %s19, 3
    %p141 = por %p139, %p140
    %p143 = scmp.ne.s32.totalorder %s126, %s142
    %p144 = scmp.eq.s32.totalorder %s19, 0
    %p145 = por %p143, %p144
    %s147 = sadd.s32 %s146, 1
    %p150 = scmp.eq.s32.totalorder %s13, 3
    %p151 = scmp.ne.s32.totalorder %s146, %s148
    %p152 = scmp.eq.s32.totalorder %s13, 0
    %p153 = por %p151, %p152
    %p154 = scmp.ne.s32.totalorder %s146, %s148
    %p155 = scmp.eq.s32.totalorder %s18, 3
    %p156 = por %p154, %p155
    %p157 = scmp.ne.s32.totalorder %s148, %s149
    %p158 = scmp.eq.s32.totalorder %s18, 0
    %p159 = por %p157, %p158
    %p160 = scmp.ne.s32.totalorder %s148, %s149
    %p161 = scmp.eq.s32.totalorder %s19, 3
    %p162 = por %p160, %p161
    %p164 = scmp.ne.s32.totalorder %s149, %s163
    %p165 = scmp.eq.s32.totalorder %s19, 0
    %p166 = por %p164, %p165
    %s168 = sadd.s32 %s167, 1
    %p171 = scmp.eq.s32.totalorder %s13, 3
    %p172 = scmp.ne.s32.totalorder %s167, %s169
    %p173 = scmp.eq.s32.totalorder %s13, 0
    %p174 = por %p172, %p173
    %p175 = scmp.ne.s32.totalorder %s167, %s169
    %p176 = scmp.eq.s32.totalorder %s18, 3
    %p177 = por %p175, %p176
    %p178 = scmp.ne.s32.totalorder %s169, %s170
    %p179 = scmp.eq.s32.totalorder %s18, 0
    %p180 = por %p178, %p179
    %p181 = scmp.ne.s32.totalorder %s169, %s170
    %p182 = scmp.eq.s32.totalorder %s19, 3
    %p183 = por %p181, %p182
    %p185 = scmp.ne.s32.totalorder %s170, %s184
    %p186 = scmp.eq.s32.totalorder %s19, 0
    %p187 = por %p185, %p186
    %p188 = scmp.le.s32.totalorder 1, %s13
    %p189 = scmp.lt.s32.totalorder %s13, 5
    %p190 = pnand %p188, %p189
    %p191 = pneg %p190
    // Predicated region
    $region9: #{gconvlstm_forward.2} parent=5 // pred_check
      _
    $region10: #{gconvlstm_forward.2} parent=5 // pred_check_branch
      %193 = sbr.rel (%p190) target = $region12
    $region11: #{gconvlstm_forward.2} parent=5 // pred_region
      %s194 = ssub.s32 %s13, 1
      // Predicated region
      $region13: #{gconvlstm_forward.2} parent=11 // pred_check
        %p195 = pneg %p60
      $region14: #{gconvlstm_forward.2} parent=11 // pred_check_branch
        %197 = sbr.rel (%p195) target = $region16
      $region15: #{gconvlstm_forward.2} parent=11 // pred_region
        _
      $region16: #{gconvlstm_forward.2} parent=11 // pred_fallthru
        _
    $region12: #{gconvlstm_forward.2} parent=5 // pred_fallthru
      _
    %p198 = scmp.lt.s32.totalorder %s13, 4
    // Predicated region
    $region17: #{gconvlstm_forward.2} parent=5 // pred_check
      %p199 = pneg %p198
    $region18: #{gconvlstm_forward.2} parent=5 // pred_check_branch
      %201 = sbr.rel (%p199) target = $region20
    $region19: #{gconvlstm_forward.2} parent=5 // pred_region
      // Predicated region
      $region21: #{gconvlstm_forward.2} parent=19 // pred_check
        %p202 = pneg %p33
      $region22: #{gconvlstm_forward.2} parent=19 // pred_check_branch
        %204 = sbr.rel (%p202) target = $region24
      $region23: #{gconvlstm_forward.2} parent=19 // pred_region
        %p205 = scmp.lt.s32.totalorder %s13, 3
        %s206 = scalar_select %p205, %s13, 3
        %s207 = smul.addr %s206, 2
        %s208 = smul.addr %s207, 8
        %s209 = scalar_lea.vmem %s0, %s208
      $region24: #{gconvlstm_forward.2} parent=19 // pred_fallthru
        _
      // Predicated region
      $region25: #{gconvlstm_forward.2} parent=19 // pred_check
        %p210 = pneg %p80
      $region26: #{gconvlstm_forward.2} parent=19 // pred_check_branch
        %212 = sbr.rel (%p210) target = $region28
      $region27: #{gconvlstm_forward.2} parent=19 // pred_region
        %p213 = scmp.lt.s32.totalorder %s13, 3
        %s214 = scalar_select %p213, %s13, 3
        %s215 = smul.addr %s214, 4
        %s216 = scalar_lea.vmem %s2, %s215
      $region28: #{gconvlstm_forward.2} parent=19 // pred_fallthru
        _
      // Predicated region
      $region29: #{gconvlstm_forward.2} parent=19 // pred_check
        %p217 = pneg %p106
      $region30: #{gconvlstm_forward.2} parent=19 // pred_check_branch
        %219 = sbr.rel (%p217) target = $region32
      $region31: #{gconvlstm_forward.2} parent=19 // pred_region
        %p220 = scmp.lt.s32.totalorder %s13, 3
        %s221 = scalar_select %p220, %s13, 3
        %s222 = smul.addr %s221, 4
        %s223 = smul.addr %s222, 8
        %s224 = scalar_lea.vmem %s3, %s223
      $region32: #{gconvlstm_forward.2} parent=19 // pred_fallthru
        _
      // Predicated region
      $region33: #{gconvlstm_forward.2} parent=19 // pred_check
        %p225 = pneg %p132
      $region34: #{gconvlstm_forward.2} parent=19 // pred_check_branch
        %227 = sbr.rel (%p225) target = $region36
      $region35: #{gconvlstm_forward.2} parent=19 // pred_region
        %p228 = scmp.lt.s32.totalorder %s13, 3
        %s229 = scalar_select %p228, %s13, 3
        %s230 = scalar_lea.vmem %s4, %s229
      $region36: #{gconvlstm_forward.2} parent=19 // pred_fallthru
        _
    $region20: #{gconvlstm_forward.2} parent=5 // pred_fallthru
      _
    %p231 = scmp.le.s32.totalorder 1, %s13
    %p232 = scmp.lt.s32.totalorder %s13, 5
    %p233 = pnand %p231, %p232
    %p234 = pneg %p233
    // Predicated region
    $region37: #{gconvlstm_forward.2} parent=5 // pred_check
      _
    $region38: #{gconvlstm_forward.2} parent=5 // pred_check_branch
      %236 = sbr.rel (%p233) target = $region40
    $region39: #{gconvlstm_forward.2} parent=5 // pred_region
      %s237 = ssub.s32 %s13, 1
      %p238 = scmp.lt.s32.totalorder %s18, 3
      %s239 = scalar_select %p238, %s18, 3
      %s240 = smul.addr %s239, 2
      %s241 = smul.addr %s240, 8
      %s242 = scalar_lea.vmem %s0, %s241
      %p243 = pneg %p39
      %p244 = pneg %p36
      %p245 = pneg %p60
      %p246 = pneg %p57
      %p247 = scmp.lt.s32.totalorder %s18, 3
      %s248 = scalar_select %p247, %s18, 3
      %s249 = smul.addr %s248, 4
      %s250 = scalar_lea.vmem %s2, %s249
      %p251 = pneg %p86
      %p252 = pneg %p83
      %p253 = scmp.lt.s32.totalorder %s18, 3
      %s254 = scalar_select %p253, %s18, 3
      %s255 = smul.addr %s254, 4
      %s256 = smul.addr %s255, 8
      %s257 = scalar_lea.vmem %s3, %s256
      %p258 = pneg %p112
      %p259 = pneg %p109
      %p260 = scmp.lt.s32.totalorder %s18, 3
      %s261 = scalar_select %p260, %s18, 3
      %s262 = scalar_lea.vmem %s4, %s261
      %p263 = pneg %p138
      %p264 = pneg %p135
      %p265 = pneg %p159
      %p266 = pneg %p156
      %p267 = pneg %p180
      %p268 = pneg %p177
      %p269 = scmp.lt.s32.totalorder %s18, 3
      %s270 = scalar_select %p269, %s18, 3
      %s271 = smul.addr %s270, 2
      %s272 = smul.addr %s271, 8
      %s273 = scalar_lea.vmem %s0, %s272
      %p274 = scmp.lt.s32.totalorder %s18, 3
      %s275 = scalar_select %p274, %s18, 3
      %s276 = smul.addr %s275, 4
      %s277 = scalar_lea.vmem %s2, %s276
      %p278 = scmp.lt.s32.totalorder %s18, 3
      %s279 = scalar_select %p278, %s18, 3
      %s280 = smul.addr %s279, 4
      %s281 = smul.addr %s280, 8
      %s282 = scalar_lea.vmem %s3, %s281
      %p283 = scmp.lt.s32.totalorder %s18, 3
      %s284 = scalar_select %p283, %s18, 3
      %s285 = scalar_lea.vmem %s4, %s284
      %p286 = scmp.eq.s32.totalorder %s18, 0
      // Predicated region
      $region41: #{gconvlstm_forward.2} parent=39 // pred_check
        %p287 = pneg %p286
      $region42: #{gconvlstm_forward.2} parent=39 // pred_check_branch
        %289 = sbr.rel (%p287) target = $region44
      $region43: #{gconvlstm_forward.2} parent=39 // pred_region
        %vm290 = vcmask 261120
        %291 = vst.msk [vmem:[#allocation2] sm:$0xff] %vm290, 0.0
        %292 = vst.msk [vmem:[#allocation2 + $0x8] sm:$0xff] %vm290, 0.0
        %293 = vst.msk [vmem:[#allocation3] sm:$0xff] %vm290, 0.0
        %294 = vst.msk [vmem:[#allocation3 + $0x8] sm:$0xff] %vm290, 0.0
      $region44: #{gconvlstm_forward.2} parent=39 // pred_fallthru
        _
      %v295 = vld [vmem:[%s273] sm:$0xff]
      %v296 = vld [vmem:[%s273 + $0x8] sm:$0xff]
      %v297 = vld [vmem:[%s277] sm:$0xf]
      %v298 = vld [vmem:[#allocation2] sm:$0xff]
      %v299 = vld [vmem:[#allocation2 + $0x8] sm:$0xff]
      %v300 = vld [vmem:[%s282] sm:$0xff]
      %v301 = vld [vmem:[%s282 + $0x8] sm:$0xff]
      %v302 = vld [vmem:[%s282 + $0x10] sm:$0xff]
      %v303 = vld [vmem:[%s282 + $0x18] sm:$0xff]
      %vm304 = vcmask 261120
      %v306 = vsel %vm304, %v298, 0
      %v309 = vsel %vm304, %v299, 0
      %311 = vmatprep.subr.mxu0 0.0
      %312 = vmatpush1.msra.mxu0 %v300
      %313 = vmatprep.subr.mxu0 0.0
      %314 = vmatpush1.msra.mxu0 %v301
      %315 = vmatprep.subr.mxu0 0.0
      %316 = vmatpush1.msra.mxu0 %v302
      %317 = vmatprep.subr.mxu0 0.0
      %318 = vmatpush1.msra.mxu0 %v303
      %319 = vmatprep.subr.mxu0 0.0
      %320 = vmatpush1.msra.mxu0 0.0
      %321 = vmatprep.subr.mxu0 0.0
      %322 = vmatpush1.msra.mxu0 0.0
      %323 = vmatprep.subr.mxu0 0.0
      %324 = vmatpush1.msra.mxu0 0.0
      %325 = vmatprep.subr.mxu0 0.0
      %326 = vmatpush1.msra.mxu0 0.0
      %327 = vmatprep.subr.mxu0 0.0
      %328 = vmatpush1.msra.mxu0 0.0
      %329 = vmatprep.subr.mxu0 0.0
      %330 = vmatpush1.msra.mxu0 0.0
      %331 = vmatprep.subr.mxu0 0.0
      %332 = vmatpush1.msra.mxu0 0.0
      %333 = vmatprep.subr.mxu0 0.0
      %334 = vmatpush1.msra.mxu0 0.0
      %335 = vmatprep.subr.mxu0 0.0
      %336 = vmatpush1.msra.mxu0 0.0
      %337 = vmatprep.subr.mxu0 0.0
      %338 = vmatpush1.msra.mxu0 0.0
      %339 = vmatprep.subr.mxu0 0.0
      %340 = vmatpush1.msra.mxu0 0.0
      %341 = vmatprep.subr.mxu0 0.0
      %342 = vmatpush1.msra.mxu0 0.0
      %343 = vmatprep.subr.mxu0 0.0
      %344 = vmatpush1.msra.mxu0 0.0
      %345 = vmatprep.subr.mxu0 0.0
      %346 = vmatpush1.msra.mxu0 0.0
      %347 = vmatprep.subr.mxu0 0.0
      %348 = vmatpush1.msra.mxu0 0.0
      %349 = vmatprep.subr.mxu0 0.0
      %350 = vmatpush1.msra.mxu0 0.0
      %351 = vmatprep.subr.mxu0 0.0
      %352 = vmatpush1.msra.mxu0 0.0
      %353 = vmatprep.subr.mxu0 0.0
      %354 = vmatpush1.msra.mxu0 0.0
      %355 = vmatprep.subr.mxu0 0.0
      %356 = vmatpush1.msra.mxu0 0.0
      %357 = vmatprep.subr.mxu0 0.0
      %358 = vmatpush1.msra.mxu0 0.0
      %359 = vmatprep.subr.mxu0 0.0
      %360 = vmatpush1.msra.mxu0 0.0
      %361 = vmatprep.subr.mxu0 0.0
      %362 = vmatpush1.msra.mxu0 0.0
      %363 = vmatprep.subr.mxu0 0.0
      %364 = vmatpush1.msra.mxu0 0.0
      %365 = vmatprep.subr.mxu0 0.0
      %366 = vmatpush1.msra.mxu0 0.0
      %367 = vmatprep.subr.mxu0 0.0
      %368 = vmatpush1.msra.mxu0 0.0
      %369 = vmatprep.subr.mxu0 0.0
      %370 = vmatpush1.msra.mxu0 0.0
      %371 = vmatprep.subr.mxu0 0.0
      %372 = vmatpush1.msra.mxu0 0.0
      %373 = vmatprep.subr.mxu0 0.0
      %374 = vmatpush1.msra.mxu0 0.0
      %375 = vmatprep.mubr.f32.mxu0 0.0
      %376 = vmatmul.mubr.f32.gmra.mrb[0].mxu0 %v306
      %v377 = vpop.f32.mrb[0].mxu0
      %v378 = vadd.f32 0.0, %v377
      %v379 = vpop.f32.mrb[0].mxu0
      %380 = vmatprep.mubr.f32.mxu0 0.0
      %381 = vmatmul.mubr.f32.gmra.mrb[0].mxu0 %v309
      %v382 = vpop.f32.mrb[0].mxu0
      %v383 = vadd.f32 0.0, %v382
      %v384 = vpop.f32.mrb[0].mxu0
      %385 = vdwg.mxu0
      %v386 = vld [vmem:[%s1] sm:$0xff]
      %v387 = vld [vmem:[%s1 + $0x8] sm:$0xff]
      %vm388 = vcmask 31744
      %v390 = vsel %vm388, %v295, 0
      %v393 = vsel %vm388, %v296, 0
      %vm395 = vcmask 1043456
      %v397 = vsel %vm395, %v297, 0
      %399 = vmatprep.subr.mxu0 0.0
      %400 = vmatpush1.msra.mxu0 %v397
      %401 = vmatprep.subr.mxu0 0.0
      %402 = vmatpush1.msra.mxu0 0.0
      %403 = vmatprep.subr.mxu0 0.0
      %404 = vmatpush1.msra.mxu0 0.0
      %405 = vmatprep.subr.mxu0 0.0
      %406 = vmatpush1.msra.mxu0 0.0
      %407 = vmatprep.subr.mxu0 0.0
      %408 = vmatpush1.msra.mxu0 0.0
      %409 = vmatprep.subr.mxu0 0.0
      %410 = vmatpush1.msra.mxu0 0.0
      %411 = vmatprep.subr.mxu0 0.0
      %412 = vmatpush1.msra.mxu0 0.0
      %413 = vmatprep.subr.mxu0 0.0
      %414 = vmatpush1.msra.mxu0 0.0
      %415 = vmatprep.subr.mxu0 0.0
      %416 = vmatpush1.msra.mxu0 0.0
      %417 = vmatprep.subr.mxu0 0.0
      %418 = vmatpush1.msra.mxu0 0.0
      %419 = vmatprep.subr.mxu0 0.0
      %420 = vmatpush1.msra.mxu0 0.0
      %421 = vmatprep.subr.mxu0 0.0
      %422 = vmatpush1.msra.mxu0 0.0
      %423 = vmatprep.subr.mxu0 0.0
      %424 = vmatpush1.msra.mxu0 0.0
      %425 = vmatprep.subr.mxu0 0.0
      %426 = vmatpush1.msra.mxu0 0.0
      %427 = vmatprep.subr.mxu0 0.0
      %428 = vmatpush1.msra.mxu0 0.0
      %429 = vmatprep.subr.mxu0 0.0
      %430 = vmatpush1.msra.mxu0 0.0
      %431 = vmatprep.subr.mxu0 0.0
      %432 = vmatpush1.msra.mxu0 0.0
      %433 = vmatprep.subr.mxu0 0.0
      %434 = vmatpush1.msra.mxu0 0.0
      %435 = vmatprep.subr.mxu0 0.0
      %436 = vmatpush1.msra.mxu0 0.0
      %437 = vmatprep.subr.mxu0 0.0
      %438 = vmatpush1.msra.mxu0 0.0
      %439 = vmatprep.subr.mxu0 0.0
      %440 = vmatpush1.msra.mxu0 0.0
      %441 = vmatprep.subr.mxu0 0.0
      %442 = vmatpush1.msra.mxu0 0.0
      %443 = vmatprep.subr.mxu0 0.0
      %444 = vmatpush1.msra.mxu0 0.0
      %445 = vmatprep.subr.mxu0 0.0
      %446 = vmatpush1.msra.mxu0 0.0
      %447 = vmatprep.subr.mxu0 0.0
      %448 = vmatpush1.msra.mxu0 0.0
      %449 = vmatprep.subr.mxu0 0.0
      %450 = vmatpush1.msra.mxu0 0.0
      %451 = vmatprep.subr.mxu0 0.0
      %452 = vmatpush1.msra.mxu0 0.0
      %453 = vmatprep.subr.mxu0 0.0
      %454 = vmatpush1.msra.mxu0 0.0
      %455 = vmatprep.subr.mxu0 0.0
      %456 = vmatpush1.msra.mxu0 0.0
      %457 = vmatprep.subr.mxu0 0.0
      %458 = vmatpush1.msra.mxu0 0.0
      %459 = vmatprep.subr.mxu0 0.0
      %460 = vmatpush1.msra.mxu0 0.0
      %461 = vmatprep.subr.mxu0 0.0
      %462 = vmatpush1.msra.mxu0 0.0
      %463 = vmatprep.mubr.f32.mxu0 0.0
      %464 = vmatmul.mubr.f32.gmra.mrb[0].mxu0 %v390
      %v465 = vpop.f32.mrb[0].mxu0
      %v466 = vadd.f32 %v378, %v465
      %v467 = vpop.f32.mrb[0].mxu0
      %468 = vmatprep.mubr.f32.mxu0 0.0
      %469 = vmatmul.mubr.f32.gmra.mrb[0].mxu0 %v393
      %v470 = vpop.f32.mrb[0].mxu0
      %v471 = vadd.f32 %v383, %v470
      %v472 = vpop.f32.mrb[0].mxu0
      %473 = vdwg.mxu0
      %v474 = vld [vmem:[%s285] sm:$0x1]
      %v476 = vlaneseq
      %v477 = vshrl.u32 %v476, 7
      %v478 = vsub.s32 0, %v477
      %v479 = vrot.slane %v474, %v478
      %vm481 = vcmask 130048
      %v483 = vsel %vm481, %v386, 0
      %v486 = vsel %vm481, %v387, 0
      %488 = vmatprep.subr.mxu0 0.0
      %489 = vmatpush1.msra.mxu0 %v466
      %490 = vmatprep.subr.mxu0 0.0
      %491 = vmatpush1.msra.mxu0 %v471
      %492 = vmatprep.subr.mxu0 0.0
      %493 = vmatpush1.msra.mxu0 0.0
      %494 = vmatprep.subr.mxu0 0.0
      %495 = vmatpush1.msra.mxu0 0.0
      %496 = vmatprep.subr.mxu0 0.0
      %497 = vmatpush1.msra.mxu0 0.0
      %498 = vmatprep.subr.mxu0 0.0
      %499 = vmatpush1.msra.mxu0 0.0
      %500 = vmatprep.subr.mxu0 0.0
      %501 = vmatpush1.msra.mxu0 0.0
      %502 = vmatprep.subr.mxu0 0.0
      %503 = vmatpush1.msra.mxu0 0.0
      %504 = vmatprep.subr.mxu0 0.0
      %505 = vmatpush1.msra.mxu0 0.0
      %506 = vmatprep.subr.mxu0 0.0
      %507 = vmatpush1.msra.mxu0 0.0
      %508 = vmatprep.subr.mxu0 0.0
      %509 = vmatpush1.msra.mxu0 0.0
      %510 = vmatprep.subr.mxu0 0.0
      %511 = vmatpush1.msra.mxu0 0.0
      %512 = vmatprep.subr.mxu0 0.0
      %513 = vmatpush1.msra.mxu0 0.0
      %514 = vmatprep.subr.mxu0 0.0
      %515 = vmatpush1.msra.mxu0 0.0
      %516 = vmatprep.subr.mxu0 0.0
      %517 = vmatpush1.msra.mxu0 0.0
      %518 = vmatprep.subr.mxu0 0.0
      %519 = vmatpush1.msra.mxu0 0.0
      %520 = vmatprep.subr.mxu0 0.0
      %521 = vmatpush1.msra.mxu0 0.0
      %522 = vmatprep.subr.mxu0 0.0
      %523 = vmatpush1.msra.mxu0 0.0
      %524 = vmatprep.subr.mxu0 0.0
      %525 = vmatpush1.msra.mxu0 0.0
      %526 = vmatprep.subr.mxu0 0.0
      %527 = vmatpush1.msra.mxu0 0.0
      %528 = vmatprep.subr.mxu0 0.0
      %529 = vmatpush1.msra.mxu0 0.0
      %530 = vmatprep.subr.mxu0 0.0
      %531 = vmatpush1.msra.mxu0 0.0
      %532 = vmatprep.subr.mxu0 0.0
      %533 = vmatpush1.msra.mxu0 0.0
      %534 = vmatprep.subr.mxu0 0.0
      %535 = vmatpush1.msra.mxu0 0.0
      %536 = vmatprep.subr.mxu0 0.0
      %537 = vmatpush1.msra.mxu0 0.0
      %538 = vmatprep.subr.mxu0 0.0
      %539 = vmatpush1.msra.mxu0 0.0
      %540 = vmatprep.subr.mxu0 0.0
      %541 = vmatpush1.msra.mxu0 0.0
      %542 = vmatprep.subr.mxu0 0.0
      %543 = vmatpush1.msra.mxu0 0.0
      %544 = vmatprep.subr.mxu0 0.0
      %545 = vmatpush1.msra.mxu0 0.0
      %546 = vmatprep.subr.mxu0 0.0
      %547 = vmatpush1.msra.mxu0 0.0
      %548 = vmatprep.subr.mxu0 0.0
      %549 = vmatpush1.msra.mxu0 0.0
      %550 = vmatprep.subr.mxu0 0.0
      %551 = vmatpush1.msra.mxu0 0.0
      %552 = vmatprep.mubr.f32.mxu0 0.0
      %553 = vmatmul.mubr.f32.gmra.mrb[0].mxu0 %v483
      %v554 = vpop.f32.mrb[0].mxu0
      %v555 = vadd.f32 %v479, %v554
      %v556 = vpop.f32.mrb[0].mxu0
      %557 = vmatprep.mubr.f32.mxu0 0.0
      %558 = vmatmul.mubr.f32.gmra.mrb[0].mxu0 %v486
      %v559 = vpop.f32.mrb[0].mxu0
      %v560 = vadd.f32 %v479, %v559
      %v561 = vpop.f32.mrb[0].mxu0
      %562 = vdwg.mxu0
      %v563 = vxor.u32 %v555, 2147483648
      %v564 = vxor.u32 %v560, 2147483648
      %v565 = vmul.f32 %v563, 1.442695
      %v566 = vpow.pop %v565
      %v567 = vmul.f32 %v564, 1.442695
      %v568 = vpow.pop %v567
      %v569 = vadd.f32 %v566, 1.0
      %v570 = vadd.f32 %v568, 1.0
      %v571 = vrcp.pop %v569
      %v572 = vmul.f32 1.0, %v571
      %v573 = vrcp.pop %v570
      %v574 = vmul.f32 1.0, %v573
      %v575 = vtanh.pop %v555
      %v576 = vtanh.pop %v560
      %v577 = vld [vmem:[#allocation3] sm:$0xff]
      %v578 = vld [vmem:[#allocation3 + $0x8] sm:$0xff]
      %v579 = vmul.f32 %v572, %v577
      %v580 = vmul.f32 %v574, %v578
      %583 = vrot.lane.b32.xlu0 %v575, 64
      %v584 = vpop.permute.xlu0 %583
      %585 = vrot.lane.b32.xlu0 %v576, 64
      %v586 = vpop.permute.xlu0 %585
      %v589 = vmul.f32 %v572, %v584
      %v590 = vmul.f32 %v574, %v586
      %593 = vrot.lane.b32.xlu0 %v589, 96
      %v594 = vpop.permute.xlu0 %593
      %595 = vrot.lane.b32.xlu0 %v590, 96
      %v596 = vpop.permute.xlu0 %595
      %v599 = vadd.f32 %v579, %v594
      %v600 = vadd.f32 %v580, %v596
      %v601 = vtanh.pop %v599
      %v602 = vtanh.pop %v600
      %605 = vrot.lane.b32.xlu0 %v601, 64
      %v606 = vpop.permute.xlu0 %605
      %607 = vrot.lane.b32.xlu0 %v602, 64
      %v608 = vpop.permute.xlu0 %607
      %v611 = vmul.f32 %v572, %v606
      %v612 = vmul.f32 %v574, %v608
      %615 = vrot.lane.b32.xlu0 %v611, 64
      %v616 = vpop.permute.xlu0 %615
      %617 = vrot.lane.b32.xlu0 %v612, 64
      %v618 = vpop.permute.xlu0 %617
      %621 = vst.msk [vmem:[#allocation2] sm:$0xff] %vm304, %v616
      %622 = vst.msk [vmem:[#allocation2 + $0x8] sm:$0xff] %vm304, %v618
      %623 = vst.msk [vmem:[#allocation3] sm:$0xff] %vm304, %v599
      %624 = vst.msk [vmem:[#allocation3 + $0x8] sm:$0xff] %vm304, %v600
      %p625 = scmp.eq.s32.totalorder %s18, 3
      // Predicated region
      $region45: #{gconvlstm_forward.2} parent=39 // pred_check
        %p626 = pneg %p625
      $region46: #{gconvlstm_forward.2} parent=39 // pred_check_branch
        %628 = sbr.rel (%p626) target = $region48
      $region47: #{gconvlstm_forward.2} parent=39 // pred_region
        %629 = vst.msk [vmem:[%s5] sm:$0xff] %vm304, %v616
        %630 = vst.msk [vmem:[%s5 + $0x8] sm:$0xff] %vm304, %v618
        %631 = vst.msk [vmem:[%s6] sm:$0xff] %vm304, %v599
        %632 = vst.msk [vmem:[%s6 + $0x8] sm:$0xff] %vm304, %v600
      $region48: #{gconvlstm_forward.2} parent=39 // pred_fallthru
        _
      // Predicated region
      $region49: #{gconvlstm_forward.2} parent=39 // pred_check
        %p633 = pneg %p156
      $region50: #{gconvlstm_forward.2} parent=39 // pred_check_branch
        %635 = sbr.rel (%p633) target = $region52
      $region51: #{gconvlstm_forward.2} parent=39 // pred_region
        _
      $region52: #{gconvlstm_forward.2} parent=39 // pred_fallthru
        _
      // Predicated region
      $region53: #{gconvlstm_forward.2} parent=39 // pred_check
        %p636 = pneg %p177
      $region54: #{gconvlstm_forward.2} parent=39 // pred_check_branch
        %638 = sbr.rel (%p636) target = $region56
      $region55: #{gconvlstm_forward.2} parent=39 // pred_region
        _
      $region56: #{gconvlstm_forward.2} parent=39 // pred_fallthru
        _
      // Predicated region
      $region57: #{gconvlstm_forward.2} parent=39 // pred_check
        %p639 = pneg %p156
      $region58: #{gconvlstm_forward.2} parent=39 // pred_check_branch
        %641 = sbr.rel (%p639) target = $region60
      $region59: #{gconvlstm_forward.2} parent=39 // pred_region
        _
      $region60: #{gconvlstm_forward.2} parent=39 // pred_fallthru
        _
      // Predicated region
      $region61: #{gconvlstm_forward.2} parent=39 // pred_check
        %p642 = pneg %p177
      $region62: #{gconvlstm_forward.2} parent=39 // pred_check_branch
        %644 = sbr.rel (%p642) target = $region64
      $region63: #{gconvlstm_forward.2} parent=39 // pred_region
        _
      $region64: #{gconvlstm_forward.2} parent=39 // pred_fallthru
        _
    $region40: #{gconvlstm_forward.2} parent=5 // pred_fallthru
      _
    %p645 = scmp.le.s32.totalorder 2, %s13
    // Predicated region
    $region65: #{gconvlstm_forward.2} parent=5 // pred_check
      %p646 = pneg %p645
    $region66: #{gconvlstm_forward.2} parent=5 // pred_check_branch
      %648 = sbr.rel (%p646) target = $region68
    $region67: #{gconvlstm_forward.2} parent=5 // pred_region
      %s649 = ssub.s32 %s13, 2
    $region68: #{gconvlstm_forward.2} parent=5 // pred_fallthru
      _
  $region6: #{gconvlstm_forward.2} parent=0 // loop_footer
    %s17 = sadd.s32 1, %s13
  $region7: #{gconvlstm_forward.2} parent=0 // loop_footer_branch
    %12 = sbr.rel target = $region3
  $region8: #{gconvlstm_forward.2} parent=0 // loop_exit
    _

</llo_original>
